<compile_context>
chip_gen: v6e
topology: v6e:2x2x1
jax: 0.10.0
libtpu: 0.0.40
codegen_flags: <defaults>
</compile_context>

<pallas_src>
import functools

import jax
import jax.numpy as jnp
from jax.experimental import pallas as pl
from jax.experimental.pallas import tpu as pltpu


def _round_up(x, m):
    return (x + m - 1) // m * m


# ----------------------------------------------------------------------------
# Pallas kernel: 4 fused Linear layers (encoder 2 + decoder 2).
# x tile (TM, d_in) f32; weights bf16 (W1|W3 stacked, W2, W4); biases f32
# packed as (1, d1+d2+d3+d_out).  All matmuls: bf16 operands, f32 accumulate.
# ----------------------------------------------------------------------------
def _autoencoder_kernel(x_ref, w13_ref, w2_ref, w4_ref, b_ref, o_ref, *, dims):
    d_in, d1, d2, d3, d_out = dims

    # Static ref slices (sublane offsets multiples of 16 for bf16, lane offsets
    # multiples of 128) -> cheap views / aligned loads.
    w1 = w13_ref[0:d_in, :]                                # (d_in, d1) bf16
    w3 = w13_ref[d_in:d_in + d2, :]                        # (d2,  d3) bf16
    b1 = b_ref[:, 0:d1]
    b2 = b_ref[:, d1:d1 + d2]
    b3 = b_ref[:, d1 + d2:d1 + d2 + d3]
    b4 = b_ref[:, d1 + d2 + d3:d1 + d2 + d3 + d_out]

    # Encoder: Linear -> ReLU, Linear -> ReLU.
    h = jnp.dot(x_ref[...].astype(jnp.bfloat16), w1,
                preferred_element_type=jnp.float32) + b1
    h = jnp.maximum(h, 0.0)
    h = jnp.dot(h.astype(jnp.bfloat16), w2_ref[...],
                preferred_element_type=jnp.float32) + b2
    h = jnp.maximum(h, 0.0)

    # Decoder: Linear -> ReLU, Linear (no activation on the last layer).
    h = jnp.dot(h.astype(jnp.bfloat16), w3,
                preferred_element_type=jnp.float32) + b3
    h = jnp.maximum(h, 0.0)
    h = jnp.dot(h.astype(jnp.bfloat16), w4_ref[...],
                preferred_element_type=jnp.float32) + b4

    o_ref[...] = h.astype(o_ref.dtype)


# ----------------------------------------------------------------------------
# Parameter packing (specific to this 4-layer config: d1 == d3 so W1 and W3
# share lane width and can be stacked along sublanes).
# ----------------------------------------------------------------------------
def pack_params(params):
    (w1, b1), (w2, b2), (w3, b3), (w4, b4) = params
    assert w1.shape[1] == w3.shape[1], "packing assumes W1/W3 share out width"
    w13 = jnp.concatenate([w1, w3], axis=0).astype(jnp.bfloat16)    # (d_in+d2, d1)
    w2b = w2.astype(jnp.bfloat16)                                   # (d1, d2)
    w4b = w4.astype(jnp.bfloat16)                                   # (d3, d_out)
    biases = jnp.concatenate([b1, b2, b3, b4], axis=1)              # (1, sum) f32
    dims = (w1.shape[0], w1.shape[1], w2.shape[1], w3.shape[1], w4.shape[1])
    return (w13, w2b, w4b, biases), dims


# ----------------------------------------------------------------------------
# Wrapper: flatten NCHW -> (B, C*H*W), tile the batch axis, run kernel,
# un-pad and reshape back.
# ----------------------------------------------------------------------------
def autoencoder_forward(x_nchw, packed, dims, *, block_m=256):
    w13, w2, w4, biases = packed
    d_in, d1, d2, d3, d_out = dims

    input_shape = x_nchw.shape
    B = input_shape[0]
    x2d = x_nchw.reshape(B, -1).astype(jnp.float32)        # flatten(start_dim=1)
    assert x2d.shape[1] == d_in

    # Batch tile: multiple of 8 sublanes; small batches don't get padded to a
    # huge tile, large batches get big lane-dense tiles (block_m rows).
    assert block_m % 8 == 0
    tm = min(block_m, _round_up(B, 8))
    b_pad = _round_up(B, tm)
    if b_pad != B:
        x2d = jnp.pad(x2d, ((0, b_pad - B), (0, 0)))
    grid = (b_pad // tm,)

    # Right-sized VMEM limit: double-buffered x/out tiles + resident weights
    # (~1.2 MiB bf16) + headroom.  Stays well inside v7x's 64 MiB.
    vmem_limit = min(int(4 * tm * max(d_in, d_out) * 4) + (6 << 20), 64 << 20)

    kernel = functools.partial(_autoencoder_kernel, dims=dims)
    out2d = pl.pallas_call(
        kernel,
        out_shape=jax.ShapeDtypeStruct((b_pad, d_out), jnp.float32),
        grid_spec=pltpu.PrefetchScalarGridSpec(
            num_scalar_prefetch=0,
            grid=grid,
            in_specs=[
                pl.BlockSpec((tm, d_in), lambda i: (i, 0)),   # x: streamed per tile
                pl.BlockSpec(w13.shape, lambda i: (0, 0)),    # weights: resident
                pl.BlockSpec(w2.shape, lambda i: (0, 0)),
                pl.BlockSpec(w4.shape, lambda i: (0, 0)),
                pl.BlockSpec(biases.shape, lambda i: (0, 0)),
            ],
            out_specs=pl.BlockSpec((tm, d_out), lambda i: (i, 0)),
        ),
        compiler_params=pltpu.CompilerParams(
            dimension_semantics=("parallel",),                # v7x: shard batch tiles over 2 TCs
            vmem_limit_bytes=vmem_limit,
        ),
    )(x2d, w13, w2, w4, biases)

    return out2d[:B].reshape(input_shape)                    # out.view(input_shape)


# ----------------------------------------------------------------------------
# Deterministic parameter construction (PyTorch nn.Linear-style uniform init).
# ----------------------------------------------------------------------------
def make_linear_params(key, in_dim, out_dim):
    kw, kb = jax.random.split(key)
    bound = 1.0 / jnp.sqrt(float(in_dim))
    # PyTorch stores weight as (out, in); we keep the transposed (in, out) view.
    w_t = jax.random.uniform(kw, (in_dim, out_dim), jnp.float32, -bound, bound)
    b = jax.random.uniform(kb, (1, out_dim), jnp.float32, -bound, bound)
    return w_t, b


def reference_forward_bf16(x_nchw, params):
    """Pure-JAX reference mirroring the kernel's bf16-weight / f32-accumulate math."""
    h = x_nchw.reshape(x_nchw.shape[0], -1).astype(jnp.float32)
    n = len(params)
    for i, (w, b) in enumerate(params):
        h = jnp.dot(h.astype(jnp.bfloat16), w.astype(jnp.bfloat16),
                    preferred_element_type=jnp.float32) + b
        if i < n - 1:                                        # ReLU on all but last
            h = jnp.maximum(h, 0.0)
    return h.reshape(x_nchw.shape)


def reference_forward_f32(x_nchw, params):
    """Full-f32 reference of the original module's forward."""
    h = x_nchw.reshape(x_nchw.shape[0], -1).astype(jnp.float32)
    n = len(params)
    for i, (w, b) in enumerate(params):
        h = h @ w + b
        if i < n - 1:
            h = jnp.maximum(h, 0.0)
    return h.reshape(x_nchw.shape)


if __name__ == "__main__":
    # Module config (mirrors Autoencoder(__init__) with:
    #   input_dim=4*16*16=1024, encoder_hidden_dims=[256, 128],
    #   decoder_hidden_dims=None -> [256], added_features_dim=0,
    #   batch_normalization=False, dropout_rate=None)
    # Layer dims: encoder 1024->256->128 ; decoder 128->256->1024
    B, C, H, W = 2, 4, 16, 16
    input_dim = C * H * W
    encoder_hidden_dims = [256, 128]
    decoder_hidden_dims = encoder_hidden_dims[::-1][1:]              # [256]

    encoder_dims = [input_dim, *encoder_hidden_dims]
    decoder_dims = [encoder_dims[-1], *decoder_hidden_dims, input_dim]
    layer_dims = list(zip(encoder_dims[:-1], encoder_dims[1:])) + \
                 list(zip(decoder_dims[:-1], decoder_dims[1:]))

    key = jax.random.PRNGKey(0)
    keys = jax.random.split(key, len(layer_dims) + 2)
    params = [make_linear_params(k, di, do)
              for k, (di, do) in zip(keys[:len(layer_dims)], layer_dims)]
    packed, dims = pack_params(params)

    # --- check 1: small batch (spec shape), single grid step -----------------
    x = jax.random.normal(keys[-2], (B, C, H, W), jnp.float32)
    out = autoencoder_forward(x, packed, dims)
    out = jax.block_until_ready(out)
    assert out.shape == x.shape
    ref16 = reference_forward_bf16(x, params)
    ref32 = reference_forward_f32(x, params)
    assert jnp.allclose(out, ref16, atol=2e-3, rtol=2e-3)
    assert jnp.allclose(out, ref32, atol=3e-2, rtol=3e-2)

    # --- check 2: batched path (multi-tile grid + padding) --------------------
    B2 = 40
    x2 = jax.random.normal(keys[-1], (B2, C, H, W), jnp.float32)
    out2 = autoencoder_forward(x2, packed, dims, block_m=16)        # grid of 3 tiles
    out2 = jax.block_until_ready(out2)
    assert out2.shape == x2.shape
    ref2 = reference_forward_bf16(x2, params)
    assert jnp.allclose(out2, ref2, atol=2e-3, rtol=2e-3)

    print("KERNEL_OK")
</pallas_src>

<mosaic_0001>
module attributes {stable_mosaic.version = 11 : i64} {
  func.func @_autoencoder_kernel(%arg0: i32, %arg1: memref<8x1024xf32, #tpu.memory_space<vmem>>, %arg2: memref<1152x256xbf16, #tpu.memory_space<vmem>>, %arg3: memref<256x128xbf16, #tpu.memory_space<vmem>>, %arg4: memref<256x1024xbf16, #tpu.memory_space<vmem>>, %arg5: memref<1x1664xf32, #tpu.memory_space<vmem>>, %arg6: memref<8x1024xf32, #tpu.memory_space<vmem>>) attributes {dimension_semantics = [#tpu.dimension_semantics<parallel>], iteration_bounds = array<i64: 1>, scalar_prefetch = 0 : i64, scratch_operands = 0 : i64, tpu.core_type = #tpu.core_type<tc>, window_params = [{transform_indices = @transform_0, window_bounds = array<i64: 8, 1024>}, {pipeline_mode = #tpu.pipeline_mode<synchronous>, transform_indices = @transform_1, window_bounds = array<i64: 1152, 256>}, {pipeline_mode = #tpu.pipeline_mode<synchronous>, transform_indices = @transform_2, window_bounds = array<i64: 256, 128>}, {pipeline_mode = #tpu.pipeline_mode<synchronous>, transform_indices = @transform_3, window_bounds = array<i64: 256, 1024>}, {pipeline_mode = #tpu.pipeline_mode<synchronous>, transform_indices = @transform_4, window_bounds = array<i64: 1, 1664>}, {transform_indices = @transform_5, window_bounds = array<i64: 8, 1024>}]} {
    %c0 = arith.constant 0 : index
    %c0_0 = arith.constant 0 : index
    %0 = vector.load %arg2[%c0, %c0_0] : memref<1152x256xbf16, #tpu.memory_space<vmem>>, vector<1024x256xbf16>
    %c1024 = arith.constant 1024 : index
    %c0_1 = arith.constant 0 : index
    %1 = vector.load %arg2[%c1024, %c0_1] : memref<1152x256xbf16, #tpu.memory_space<vmem>>, vector<128x256xbf16>
    %c0_2 = arith.constant 0 : index
    %c0_3 = arith.constant 0 : index
    %2 = vector.load %arg5[%c0_2, %c0_3] : memref<1x1664xf32, #tpu.memory_space<vmem>>, vector<1x256xf32>
    %c0_4 = arith.constant 0 : index
    %c256 = arith.constant 256 : index
    %3 = vector.load %arg5[%c0_4, %c256] : memref<1x1664xf32, #tpu.memory_space<vmem>>, vector<1x128xf32>
    %c0_5 = arith.constant 0 : index
    %c384 = arith.constant 384 : index
    %4 = vector.load %arg5[%c0_5, %c384] : memref<1x1664xf32, #tpu.memory_space<vmem>>, vector<1x256xf32>
    %c0_6 = arith.constant 0 : index
    %c640 = arith.constant 640 : index
    %5 = vector.load %arg5[%c0_6, %c640] : memref<1x1664xf32, #tpu.memory_space<vmem>>, vector<1x1024xf32>
    %c0_7 = arith.constant 0 : index
    %c0_8 = arith.constant 0 : index
    %6 = vector.load %arg1[%c0_7, %c0_8] : memref<8x1024xf32, #tpu.memory_space<vmem>>, vector<8x1024xf32>
    %7 = arith.truncf %6 : vector<8x1024xf32> to vector<8x1024xbf16>
    %cst = arith.constant dense<0.000000e+00> : vector<8x256xf32>
    %8 = tpu.matmul %7, %0, %cst {dimension_numbers = #tpu.dot_dimension_numbers<[1], [0], [0], [1], [0, 0, 1, 1], [], []>} : vector<8x1024xbf16>, vector<1024x256xbf16>, vector<8x256xf32> -> vector<8x256xf32>
    %9 = vector.broadcast %2 : vector<1x256xf32> to vector<8x256xf32>
    %10 = arith.addf %8, %9 : vector<8x256xf32>
    %cst_9 = arith.constant 0.000000e+00 : f32
    %11 = vector.broadcast %cst_9 : f32 to vector<8x256xf32>
    %12 = arith.maximumf %10, %11 : vector<8x256xf32>
    %13 = arith.truncf %12 : vector<8x256xf32> to vector<8x256xbf16>
    %c0_10 = arith.constant 0 : index
    %c0_11 = arith.constant 0 : index
    %14 = vector.load %arg3[%c0_10, %c0_11] : memref<256x128xbf16, #tpu.memory_space<vmem>>, vector<256x128xbf16>
    %cst_12 = arith.constant dense<0.000000e+00> : vector<8x128xf32>
    %15 = tpu.matmul %13, %14, %cst_12 {dimension_numbers = #tpu.dot_dimension_numbers<[1], [0], [0], [1], [0, 0, 1, 1], [], []>} : vector<8x256xbf16>, vector<256x128xbf16>, vector<8x128xf32> -> vector<8x128xf32>
    %16 = vector.broadcast %3 : vector<1x128xf32> to vector<8x128xf32>
    %17 = arith.addf %15, %16 : vector<8x128xf32>
    %cst_13 = arith.constant 0.000000e+00 : f32
    %18 = vector.broadcast %cst_13 : f32 to vector<8x128xf32>
    %19 = arith.maximumf %17, %18 : vector<8x128xf32>
    %20 = arith.truncf %19 : vector<8x128xf32> to vector<8x128xbf16>
    %cst_14 = arith.constant dense<0.000000e+00> : vector<8x256xf32>
    %21 = tpu.matmul %20, %1, %cst_14 {dimension_numbers = #tpu.dot_dimension_numbers<[1], [0], [0], [1], [0, 0, 1, 1], [], []>} : vector<8x128xbf16>, vector<128x256xbf16>, vector<8x256xf32> -> vector<8x256xf32>
    %22 = vector.broadcast %4 : vector<1x256xf32> to vector<8x256xf32>
    %23 = arith.addf %21, %22 : vector<8x256xf32>
    %cst_15 = arith.constant 0.000000e+00 : f32
    %24 = vector.broadcast %cst_15 : f32 to vector<8x256xf32>
    %25 = arith.maximumf %23, %24 : vector<8x256xf32>
    %26 = arith.truncf %25 : vector<8x256xf32> to vector<8x256xbf16>
    %c0_16 = arith.constant 0 : index
    %c0_17 = arith.constant 0 : index
    %27 = vector.load %arg4[%c0_16, %c0_17] : memref<256x1024xbf16, #tpu.memory_space<vmem>>, vector<256x1024xbf16>
    %cst_18 = arith.constant dense<0.000000e+00> : vector<8x1024xf32>
    %28 = tpu.matmul %26, %27, %cst_18 {dimension_numbers = #tpu.dot_dimension_numbers<[1], [0], [0], [1], [0, 0, 1, 1], [], []>} : vector<8x256xbf16>, vector<256x1024xbf16>, vector<8x1024xf32> -> vector<8x1024xf32>
    %29 = vector.broadcast %5 : vector<1x1024xf32> to vector<8x1024xf32>
    %30 = arith.addf %28, %29 : vector<8x1024xf32>
    %c0_19 = arith.constant 0 : index
    %c0_20 = arith.constant 0 : index
    %31 = vector.load %arg6[%c0_19, %c0_20] : memref<8x1024xf32, #tpu.memory_space<vmem>>, vector<8x1024xf32>
    tpu.vector_store %arg6[%c0_19, %c0_20], %30 {strides = array<i32>} : memref<8x1024xf32, #tpu.memory_space<vmem>>, vector<8x1024xf32>,
    return
  }
  func.func @transform_0(%arg0: i32) -> (i32, i32) {
    %c0_i32 = arith.constant 0 : i32
    %c0_i32_0 = arith.constant 0 : i32
    return %arg0, %c0_i32 : i32, i32
  }
  func.func @transform_1(%arg0: i32) -> (i32, i32) {
    %c0_i32 = arith.constant 0 : i32
    %c0_i32_0 = arith.constant 0 : i32
    %c0_i32_1 = arith.constant 0 : i32
    return %c0_i32, %c0_i32_0 : i32, i32
  }
  func.func @transform_2(%arg0: i32) -> (i32, i32) {
    %c0_i32 = arith.constant 0 : i32
    %c0_i32_0 = arith.constant 0 : i32
    %c0_i32_1 = arith.constant 0 : i32
    return %c0_i32, %c0_i32_0 : i32, i32
  }
  func.func @transform_3(%arg0: i32) -> (i32, i32) {
    %c0_i32 = arith.constant 0 : i32
    %c0_i32_0 = arith.constant 0 : i32
    %c0_i32_1 = arith.constant 0 : i32
    return %c0_i32, %c0_i32_0 : i32, i32
  }
  func.func @transform_4(%arg0: i32) -> (i32, i32) {
    %c0_i32 = arith.constant 0 : i32
    %c0_i32_0 = arith.constant 0 : i32
    %c0_i32_1 = arith.constant 0 : i32
    return %c0_i32, %c0_i32_0 : i32, i32
  }
  func.func @transform_5(%arg0: i32) -> (i32, i32) {
    %c0_i32 = arith.constant 0 : i32
    %c0_i32_0 = arith.constant 0 : i32
    return %arg0, %c0_i32 : i32, i32
  }
}

</mosaic_0001>

<llo_original>
// kernel: tpu_custom_call.1
$region0: #{tpu_custom_call.1}
  #allocation0 [shape = 'u32[]', space=smem, size = 0x4, offset = 0x4, fixed_abs, tag = 'smem constant byte address 0x4 - core index']
  #allocation1 [shape = 'u32[144,128]{1,0:T(1,128)}', space=vmem, size = 0x12000, scoped, tag = 'internal scratch']
  %s0 = inlined_call_operand.hbm [shape: f32[8,1024], index: 0, kind: input, shape index: {}]
  %s1 = inlined_call_operand.hbm [shape: bf16[1152,256], index: 1, kind: input, shape index: {}]
  %s2 = inlined_call_operand.hbm [shape: bf16[256,128], index: 2, kind: input, shape index: {}]
  %s3 = inlined_call_operand.hbm [shape: bf16[256,1024], index: 3, kind: input, shape index: {}]
  %s4 = inlined_call_operand.hbm [shape: f32[1,1664], index: 4, kind: input, shape index: {}]
  %s5 = inlined_call_operand.hbm [shape: f32[8,1024], index: 5, kind: output, shape index: {}]
  %s6 = sld [smem:[#allocation0]]
  $region50: #{tpu_custom_call.1} parent=0
    _
  %s8 = ssub.s32 1, %s6
  %s9 = scalar_select 0, %s8, %s6
  $region1: #{tpu_custom_call.1} parent=0
    #allocation2 [shape = 'u8[32768]{0}', space=vmem, size = 0x8000, scoped, tag = 'input window, operand 0, single buffered']
    #allocation3 [shape = 's32[1]{0}', space=sflag, size = 0x4, scoped, tag = 'scoped memory for tpu_custom_call.1']
    #allocation4 [shape = 's32[1]{0}', space=sflag, size = 0x4, scoped, tag = 'scoped memory for tpu_custom_call.1']
    #allocation5 [shape = 'u8[589824]{0}', space=vmem, size = 0x90000, scoped, tag = 'input window, operand 1, single buffered']
    #allocation6 [shape = 's32[1]{0}', space=sflag, size = 0x4, scoped, tag = 'scoped memory for tpu_custom_call.1']
    #allocation7 [shape = 'u8[65536]{0}', space=vmem, size = 0x10000, scoped, tag = 'input window, operand 2, single buffered']
    #allocation8 [shape = 'u8[524288]{0}', space=vmem, size = 0x80000, scoped, tag = 'input window, operand 3, single buffered']
    #allocation9 [shape = 's32[1]{0}', space=sflag, size = 0x4, scoped, tag = 'scoped memory for tpu_custom_call.1']
    #allocation10 [shape = 'u8[6656]{0}', space=vmem, size = 0x1c00, scoped, tag = 'input window, operand 4, single buffered']
    #allocation11 [shape = 'u8[32768]{0}', space=vmem, size = 0x8000, scoped, tag = 'output window, operand 0, single buffered']
    %10 = vsyncpa [#allocation3], 0
    %11 = vsyncpa [#allocation6], 0
    %12 = vsyncpa [#allocation9], 0
    %13 = vsyncpa [#allocation4], 0
    // Predicated region
    $region2: #{tpu_custom_call.1} parent=1 // pred_check
      _
    $region3: #{tpu_custom_call.1} parent=1 // pred_check_branch
      %15 = sbr.rel (0) target = $region5
    $region4: #{tpu_custom_call.1} parent=1 // pred_region
      %s17 = ssub.s32 1024, 1024
      %18 = vsyncadd [#allocation3], %s17
      %s20 = sshll.u32 [#allocation2], 4
      %s21 = int_to_ptr.vmem [resolvable:$true] %s20
      %23 = dma.hbm_to_vmem [thread:$0]  %s0, 1024, %s21, [#allocation3]
    $region5: #{tpu_custom_call.1} parent=1 // pred_fallthru
      _
    // Predicated region
    $region6: #{tpu_custom_call.1} parent=1 // pred_check
      _
    $region7: #{tpu_custom_call.1} parent=1 // pred_check_branch
      %25 = sbr.rel (0) target = $region9
    $region8: #{tpu_custom_call.1} parent=1 // pred_region
      %s27 = ssub.s32 18432, 18432
      %28 = vsyncadd [#allocation6], %s27
      %s29 = sshll.u32 [#allocation5], 4
      %s30 = int_to_ptr.vmem [resolvable:$true] %s29
      %35 = dma.hbm_to_vmem [thread:$0]  %s1, 18432, %s30, [#allocation6], 128, 128, 8
    $region9: #{tpu_custom_call.1} parent=1 // pred_fallthru
      _
    // Predicated region
    $region10: #{tpu_custom_call.1} parent=1 // pred_check
      _
    $region11: #{tpu_custom_call.1} parent=1 // pred_check_branch
      %37 = sbr.rel (0) target = $region13
    $region12: #{tpu_custom_call.1} parent=1 // pred_region
      %s39 = ssub.s32 2048, 2048
      %40 = vsyncadd [#allocation6], %s39
      %s41 = sshll.u32 [#allocation7], 4
      %s42 = int_to_ptr.vmem [resolvable:$true] %s41
      %47 = dma.hbm_to_vmem [thread:$0]  %s2, 2048, %s42, [#allocation6], 64, 64, 4
    $region13: #{tpu_custom_call.1} parent=1 // pred_fallthru
      _
    // Predicated region
    $region14: #{tpu_custom_call.1} parent=1 // pred_check
      _
    $region15: #{tpu_custom_call.1} parent=1 // pred_check_branch
      %49 = sbr.rel (0) target = $region17
    $region16: #{tpu_custom_call.1} parent=1 // pred_region
      %s51 = ssub.s32 16384, 16384
      %52 = vsyncadd [#allocation9], %s51
      %s53 = sshll.u32 [#allocation8], 4
      %s54 = int_to_ptr.vmem [resolvable:$true] %s53
      %59 = dma.hbm_to_vmem [thread:$0]  %s3, 16384, %s54, [#allocation9], 512, 512, 32
    $region17: #{tpu_custom_call.1} parent=1 // pred_fallthru
      _
    // Predicated region
    $region18: #{tpu_custom_call.1} parent=1 // pred_check
      _
    $region19: #{tpu_custom_call.1} parent=1 // pred_check_branch
      %61 = sbr.rel (0) target = $region21
    $region20: #{tpu_custom_call.1} parent=1 // pred_region
      %s63 = ssub.s32 208, 208
      %64 = vsyncadd [#allocation9], %s63
      %s66 = sshll.u32 [#allocation10], 4
      %s67 = int_to_ptr.vmem [resolvable:$true] %s66
      %69 = dma.hbm_to_vmem [thread:$0]  %s4, 208, %s67, [#allocation9]
    $region21: #{tpu_custom_call.1} parent=1 // pred_fallthru
      _
    // Predicated region
    $region22: #{tpu_custom_call.1} parent=1 // pred_check
      _
    $region23: #{tpu_custom_call.1} parent=1 // pred_check_branch
      %71 = sbr.rel (0) target = $region25
    $region24: #{tpu_custom_call.1} parent=1 // pred_region
      %72 = dma.done [#allocation3], 1024
    $region25: #{tpu_custom_call.1} parent=1 // pred_fallthru
      _
    // Predicated region
    $region26: #{tpu_custom_call.1} parent=1 // pred_check
      _
    $region27: #{tpu_custom_call.1} parent=1 // pred_check_branch
      %74 = sbr.rel (0) target = $region29
    $region28: #{tpu_custom_call.1} parent=1 // pred_region
      %75 = dma.done [#allocation6], 18432
    $region29: #{tpu_custom_call.1} parent=1 // pred_fallthru
      _
    // Predicated region
    $region30: #{tpu_custom_call.1} parent=1 // pred_check
      _
    $region31: #{tpu_custom_call.1} parent=1 // pred_check_branch
      %77 = sbr.rel (0) target = $region33
    $region32: #{tpu_custom_call.1} parent=1 // pred_region
      %78 = dma.done [#allocation6], 2048
    $region33: #{tpu_custom_call.1} parent=1 // pred_fallthru
      _
    // Predicated region
    $region34: #{tpu_custom_call.1} parent=1 // pred_check
      _
    $region35: #{tpu_custom_call.1} parent=1 // pred_check_branch
      %80 = sbr.rel (0) target = $region37
    $region36: #{tpu_custom_call.1} parent=1 // pred_region
      %81 = dma.done [#allocation9], 16384
    $region37: #{tpu_custom_call.1} parent=1 // pred_fallthru
      _
    // Predicated region
    $region38: #{tpu_custom_call.1} parent=1 // pred_check
      _
    $region39: #{tpu_custom_call.1} parent=1 // pred_check_branch
      %83 = sbr.rel (0) target = $region41
    $region40: #{tpu_custom_call.1} parent=1 // pred_region
      %84 = dma.done [#allocation9], 208
    $region41: #{tpu_custom_call.1} parent=1 // pred_fallthru
      _
    %v86 = vld [vmem:[#allocation5] sm:$0xff]
    %v87 = vld [vmem:[#allocation5 + $0x8] sm:$0xff]
    %v88 = vld [vmem:[#allocation5 + $0x10] sm:$0xff]
    %v89 = vld [vmem:[#allocation5 + $0x18] sm:$0xff]
    %v90 = vld [vmem:[#allocation5 + $0x20] sm:$0xff]
    %v91 = vld [vmem:[#allocation5 + $0x28] sm:$0xff]
    %v92 = vld [vmem:[#allocation5 + $0x30] sm:$0xff]
    %v93 = vld [vmem:[#allocation5 + $0x38] sm:$0xff]
    %v94 = vld [vmem:[#allocation5 + $0x40] sm:$0xff]
    %v95 = vld [vmem:[#allocation5 + $0x48] sm:$0xff]
    %v96 = vld [vmem:[#allocation5 + $0x50] sm:$0xff]
    %v97 = vld [vmem:[#allocation5 + $0x58] sm:$0xff]
    %v98 = vld [vmem:[#allocation5 + $0x60] sm:$0xff]
    %v99 = vld [vmem:[#allocation5 + $0x68] sm:$0xff]
    %v100 = vld [vmem:[#allocation5 + $0x70] sm:$0xff]
    %v101 = vld [vmem:[#allocation5 + $0x78] sm:$0xff]
    %v102 = vld [vmem:[#allocation5 + $0x80] sm:$0xff]
    %v103 = vld [vmem:[#allocation5 + $0x88] sm:$0xff]
    %v104 = vld [vmem:[#allocation5 + $0x90] sm:$0xff]
    %v105 = vld [vmem:[#allocation5 + $0x98] sm:$0xff]
    %v106 = vld [vmem:[#allocation5 + $0xa0] sm:$0xff]
    %v107 = vld [vmem:[#allocation5 + $0xa8] sm:$0xff]
    %v108 = vld [vmem:[#allocation5 + $0xb0] sm:$0xff]
    %v109 = vld [vmem:[#allocation5 + $0xb8] sm:$0xff]
    %v110 = vld [vmem:[#allocation5 + $0xc0] sm:$0xff]
    %v111 = vld [vmem:[#allocation5 + $0xc8] sm:$0xff]
    %v112 = vld [vmem:[#allocation5 + $0xd0] sm:$0xff]
    %v113 = vld [vmem:[#allocation5 + $0xd8] sm:$0xff]
    %v114 = vld [vmem:[#allocation5 + $0xe0] sm:$0xff]
    %v115 = vld [vmem:[#allocation5 + $0xe8] sm:$0xff]
    %v116 = vld [vmem:[#allocation5 + $0xf0] sm:$0xff]
    %v117 = vld [vmem:[#allocation5 + $0xf8] sm:$0xff]
    %v118 = vld [vmem:[#allocation5 + $0x100] sm:$0xff]
    %v119 = vld [vmem:[#allocation5 + $0x108] sm:$0xff]
    %v120 = vld [vmem:[#allocation5 + $0x110] sm:$0xff]
    %v121 = vld [vmem:[#allocation5 + $0x118] sm:$0xff]
    %v122 = vld [vmem:[#allocation5 + $0x120] sm:$0xff]
    %v123 = vld [vmem:[#allocation5 + $0x128] sm:$0xff]
    %v124 = vld [vmem:[#allocation5 + $0x130] sm:$0xff]
    %v125 = vld [vmem:[#allocation5 + $0x138] sm:$0xff]
    %v126 = vld [vmem:[#allocation5 + $0x140] sm:$0xff]
    %v127 = vld [vmem:[#allocation5 + $0x148] sm:$0xff]
    %v128 = vld [vmem:[#allocation5 + $0x150] sm:$0xff]
    %v129 = vld [vmem:[#allocation5 + $0x158] sm:$0xff]
    %v130 = vld [vmem:[#allocation5 + $0x160] sm:$0xff]
    %v131 = vld [vmem:[#allocation5 + $0x168] sm:$0xff]
    %v132 = vld [vmem:[#allocation5 + $0x170] sm:$0xff]
    %v133 = vld [vmem:[#allocation5 + $0x178] sm:$0xff]
    %v134 = vld [vmem:[#allocation5 + $0x180] sm:$0xff]
    %v135 = vld [vmem:[#allocation5 + $0x188] sm:$0xff]
    %v136 = vld [vmem:[#allocation5 + $0x190] sm:$0xff]
    %v137 = vld [vmem:[#allocation5 + $0x198] sm:$0xff]
    %v138 = vld [vmem:[#allocation5 + $0x1a0] sm:$0xff]
    %v139 = vld [vmem:[#allocation5 + $0x1a8] sm:$0xff]
    %v140 = vld [vmem:[#allocation5 + $0x1b0] sm:$0xff]
    %v141 = vld [vmem:[#allocation5 + $0x1b8] sm:$0xff]
    %v142 = vld [vmem:[#allocation5 + $0x1c0] sm:$0xff]
    %v143 = vld [vmem:[#allocation5 + $0x1c8] sm:$0xff]
    %v144 = vld [vmem:[#allocation5 + $0x1d0] sm:$0xff]
    %v145 = vld [vmem:[#allocation5 + $0x1d8] sm:$0xff]
    %v146 = vld [vmem:[#allocation5 + $0x1e0] sm:$0xff]
    %v147 = vld [vmem:[#allocation5 + $0x1e8] sm:$0xff]
    %v148 = vld [vmem:[#allocation5 + $0x1f0] sm:$0xff]
    %v149 = vld [vmem:[#allocation5 + $0x1f8] sm:$0xff]
    %v150 = vld [vmem:[#allocation5 + $0x200] sm:$0xff]
    %v151 = vld [vmem:[#allocation5 + $0x208] sm:$0xff]
    %v152 = vld [vmem:[#allocation5 + $0x210] sm:$0xff]
    %v153 = vld [vmem:[#allocation5 + $0x218] sm:$0xff]
    %v154 = vld [vmem:[#allocation5 + $0x220] sm:$0xff]
    %v155 = vld [vmem:[#allocation5 + $0x228] sm:$0xff]
    %v156 = vld [vmem:[#allocation5 + $0x230] sm:$0xff]
    %v157 = vld [vmem:[#allocation5 + $0x238] sm:$0xff]
    %v158 = vld [vmem:[#allocation5 + $0x240] sm:$0xff]
    %v159 = vld [vmem:[#allocation5 + $0x248] sm:$0xff]
    %v160 = vld [vmem:[#allocation5 + $0x250] sm:$0xff]
    %v161 = vld [vmem:[#allocation5 + $0x258] sm:$0xff]
    %v162 = vld [vmem:[#allocation5 + $0x260] sm:$0xff]
    %v163 = vld [vmem:[#allocation5 + $0x268] sm:$0xff]
    %v164 = vld [vmem:[#allocation5 + $0x270] sm:$0xff]
    %v165 = vld [vmem:[#allocation5 + $0x278] sm:$0xff]
    %v166 = vld [vmem:[#allocation5 + $0x280] sm:$0xff]
    %v167 = vld [vmem:[#allocation5 + $0x288] sm:$0xff]
    %v168 = vld [vmem:[#allocation5 + $0x290] sm:$0xff]
    %v169 = vld [vmem:[#allocation5 + $0x298] sm:$0xff]
    %v170 = vld [vmem:[#allocation5 + $0x2a0] sm:$0xff]
    %v171 = vld [vmem:[#allocation5 + $0x2a8] sm:$0xff]
    %v172 = vld [vmem:[#allocation5 + $0x2b0] sm:$0xff]
    %v173 = vld [vmem:[#allocation5 + $0x2b8] sm:$0xff]
    %v174 = vld [vmem:[#allocation5 + $0x2c0] sm:$0xff]
    %v175 = vld [vmem:[#allocation5 + $0x2c8] sm:$0xff]
    %v176 = vld [vmem:[#allocation5 + $0x2d0] sm:$0xff]
    %v177 = vld [vmem:[#allocation5 + $0x2d8] sm:$0xff]
    %v178 = vld [vmem:[#allocation5 + $0x2e0] sm:$0xff]
    %v179 = vld [vmem:[#allocation5 + $0x2e8] sm:$0xff]
    %v180 = vld [vmem:[#allocation5 + $0x2f0] sm:$0xff]
    %v181 = vld [vmem:[#allocation5 + $0x2f8] sm:$0xff]
    %v182 = vld [vmem:[#allocation5 + $0x300] sm:$0xff]
    %v183 = vld [vmem:[#allocation5 + $0x308] sm:$0xff]
    %v184 = vld [vmem:[#allocation5 + $0x310] sm:$0xff]
    %v185 = vld [vmem:[#allocation5 + $0x318] sm:$0xff]
    %v186 = vld [vmem:[#allocation5 + $0x320] sm:$0xff]
    %v187 = vld [vmem:[#allocation5 + $0x328] sm:$0xff]
    %v188 = vld [vmem:[#allocation5 + $0x330] sm:$0xff]
    %v189 = vld [vmem:[#allocation5 + $0x338] sm:$0xff]
    %v190 = vld [vmem:[#allocation5 + $0x340] sm:$0xff]
    %v191 = vld [vmem:[#allocation5 + $0x348] sm:$0xff]
    %v192 = vld [vmem:[#allocation5 + $0x350] sm:$0xff]
    %v193 = vld [vmem:[#allocation5 + $0x358] sm:$0xff]
    %v194 = vld [vmem:[#allocation5 + $0x360] sm:$0xff]
    %v195 = vld [vmem:[#allocation5 + $0x368] sm:$0xff]
    %v196 = vld [vmem:[#allocation5 + $0x370] sm:$0xff]
    %v197 = vld [vmem:[#allocation5 + $0x378] sm:$0xff]
    %v198 = vld [vmem:[#allocation5 + $0x380] sm:$0xff]
    %v199 = vld [vmem:[#allocation5 + $0x388] sm:$0xff]
    %v200 = vld [vmem:[#allocation5 + $0x390] sm:$0xff]
    %v201 = vld [vmem:[#allocation5 + $0x398] sm:$0xff]
    %v202 = vld [vmem:[#allocation5 + $0x3a0] sm:$0xff]
    %v203 = vld [vmem:[#allocation5 + $0x3a8] sm:$0xff]
    %v204 = vld [vmem:[#allocation5 + $0x3b0] sm:$0xff]
    %v205 = vld [vmem:[#allocation5 + $0x3b8] sm:$0xff]
    %v206 = vld [vmem:[#allocation5 + $0x3c0] sm:$0xff]
    %v207 = vld [vmem:[#allocation5 + $0x3c8] sm:$0xff]
    %v208 = vld [vmem:[#allocation5 + $0x3d0] sm:$0xff]
    %v209 = vld [vmem:[#allocation5 + $0x3d8] sm:$0xff]
    %v210 = vld [vmem:[#allocation5 + $0x3e0] sm:$0xff]
    %v211 = vld [vmem:[#allocation5 + $0x3e8] sm:$0xff]
    %v212 = vld [vmem:[#allocation5 + $0x3f0] sm:$0xff]
    %v213 = vld [vmem:[#allocation5 + $0x3f8] sm:$0xff]
    %v214 = vld [vmem:[#allocation5 + $0x400] sm:$0xff]
    %v215 = vld [vmem:[#allocation5 + $0x408] sm:$0xff]
    %v216 = vld [vmem:[#allocation5 + $0x410] sm:$0xff]
    %v217 = vld [vmem:[#allocation5 + $0x418] sm:$0xff]
    %v218 = vld [vmem:[#allocation5 + $0x420] sm:$0xff]
    %v219 = vld [vmem:[#allocation5 + $0x428] sm:$0xff]
    %v220 = vld [vmem:[#allocation5 + $0x430] sm:$0xff]
    %v221 = vld [vmem:[#allocation5 + $0x438] sm:$0xff]
    %v222 = vld [vmem:[#allocation5 + $0x440] sm:$0xff]
    %v223 = vld [vmem:[#allocation5 + $0x448] sm:$0xff]
    %v224 = vld [vmem:[#allocation5 + $0x450] sm:$0xff]
    %v225 = vld [vmem:[#allocation5 + $0x458] sm:$0xff]
    %v226 = vld [vmem:[#allocation5 + $0x460] sm:$0xff]
    %v227 = vld [vmem:[#allocation5 + $0x468] sm:$0xff]
    %v228 = vld [vmem:[#allocation5 + $0x470] sm:$0xff]
    %v229 = vld [vmem:[#allocation5 + $0x478] sm:$0xff]
    %v230 = vld [vmem:[#allocation10] sm:$0x3]
    %v231 = vld [vmem:[#allocation10 + $0x2] sm:$0x1]
    %v232 = vld [vmem:[#allocation10 + $0x3] sm:$0x3]
    %v233 = vld [vmem:[#allocation10 + $0x5] sm:$0xff]
    %v234 = vld [vmem:[#allocation2] sm:$0xff]
    %v235 = vld [vmem:[#allocation2 + $0x8] sm:$0xff]
    %v236 = vld [vmem:[#allocation2 + $0x10] sm:$0xff]
    %v237 = vld [vmem:[#allocation2 + $0x18] sm:$0xff]
    %v238 = vld [vmem:[#allocation2 + $0x20] sm:$0xff]
    %v239 = vld [vmem:[#allocation2 + $0x28] sm:$0xff]
    %v240 = vld [vmem:[#allocation2 + $0x30] sm:$0xff]
    %v241 = vld [vmem:[#allocation2 + $0x38] sm:$0xff]
    %v242 = vpack.c.bf16 %v234, %v234
    %v243 = vpack.c.bf16 %v235, %v235
    %v244 = vpack.c.bf16 %v236, %v236
    %v245 = vpack.c.bf16 %v237, %v237
    %v246 = vpack.c.bf16 %v238, %v238
    %v247 = vpack.c.bf16 %v239, %v239
    %v248 = vpack.c.bf16 %v240, %v240
    %v249 = vpack.c.bf16 %v241, %v241
    %v251 = vlaneseq
    %v252 = vshrl.u32 %v251, 7
    %v253 = vsub.s32 0, %v252
    %v254 = vrot.slane %v230, %v253
    %v255 = vlaneseq
    %v256 = vshrl.u32 %v255, 7
    %v257 = vsub.s32 1, %v256
    %v258 = vrot.slane %v230, %v257
    %v389 = vunpack.c.l.b16 %v86
    %v390 = vunpack.c.h.b16 %v86
    %v391 = vunpack.c.l.b16 %v87
    %v392 = vunpack.c.h.b16 %v87
    %v393 = vunpack.c.l.b16 %v88
    %v394 = vunpack.c.h.b16 %v88
    %v395 = vunpack.c.l.b16 %v89
    %v396 = vunpack.c.h.b16 %v89
    %v397 = vunpack.c.l.b16 %v90
    %v398 = vunpack.c.h.b16 %v90
    %v399 = vunpack.c.l.b16 %v91
    %v400 = vunpack.c.h.b16 %v91
    %v401 = vunpack.c.l.b16 %v92
    %v402 = vunpack.c.h.b16 %v92
    %v403 = vunpack.c.l.b16 %v93
    %v404 = vunpack.c.h.b16 %v93
    %v405 = vunpack.c.l.b16 %v94
    %v406 = vunpack.c.h.b16 %v94
    %v407 = vunpack.c.l.b16 %v95
    %v408 = vunpack.c.h.b16 %v95
    %v409 = vunpack.c.l.b16 %v96
    %v410 = vunpack.c.h.b16 %v96
    %v411 = vunpack.c.l.b16 %v97
    %v412 = vunpack.c.h.b16 %v97
    %v413 = vunpack.c.l.b16 %v98
    %v414 = vunpack.c.h.b16 %v98
    %v415 = vunpack.c.l.b16 %v99
    %v416 = vunpack.c.h.b16 %v99
    %v417 = vunpack.c.l.b16 %v100
    %v418 = vunpack.c.h.b16 %v100
    %v419 = vunpack.c.l.b16 %v101
    %v420 = vunpack.c.h.b16 %v101
    %v421 = vunpack.c.l.b16 %v102
    %v422 = vunpack.c.h.b16 %v102
    %v423 = vunpack.c.l.b16 %v103
    %v424 = vunpack.c.h.b16 %v103
    %v425 = vunpack.c.l.b16 %v104
    %v426 = vunpack.c.h.b16 %v104
    %v427 = vunpack.c.l.b16 %v105
    %v428 = vunpack.c.h.b16 %v105
    %v429 = vunpack.c.l.b16 %v106
    %v430 = vunpack.c.h.b16 %v106
    %v431 = vunpack.c.l.b16 %v107
    %v432 = vunpack.c.h.b16 %v107
    %v433 = vunpack.c.l.b16 %v108
    %v434 = vunpack.c.h.b16 %v108
    %v435 = vunpack.c.l.b16 %v109
    %v436 = vunpack.c.h.b16 %v109
    %v437 = vunpack.c.l.b16 %v110
    %v438 = vunpack.c.h.b16 %v110
    %v439 = vunpack.c.l.b16 %v111
    %v440 = vunpack.c.h.b16 %v111
    %v441 = vunpack.c.l.b16 %v112
    %v442 = vunpack.c.h.b16 %v112
    %v443 = vunpack.c.l.b16 %v113
    %v444 = vunpack.c.h.b16 %v113
    %v445 = vunpack.c.l.b16 %v114
    %v446 = vunpack.c.h.b16 %v114
    %v447 = vunpack.c.l.b16 %v115
    %v448 = vunpack.c.h.b16 %v115
    %v449 = vunpack.c.l.b16 %v116
    %v450 = vunpack.c.h.b16 %v116
    %v451 = vunpack.c.l.b16 %v117
    %v452 = vunpack.c.h.b16 %v117
    %v453 = vunpack.c.l.b16 %v118
    %v454 = vunpack.c.h.b16 %v118
    %v455 = vunpack.c.l.b16 %v119
    %v456 = vunpack.c.h.b16 %v119
    %v457 = vunpack.c.l.b16 %v120
    %v458 = vunpack.c.h.b16 %v120
    %v459 = vunpack.c.l.b16 %v121
    %v460 = vunpack.c.h.b16 %v121
    %v461 = vunpack.c.l.b16 %v122
    %v462 = vunpack.c.h.b16 %v122
    %v463 = vunpack.c.l.b16 %v123
    %v464 = vunpack.c.h.b16 %v123
    %v465 = vunpack.c.l.b16 %v124
    %v466 = vunpack.c.h.b16 %v124
    %v467 = vunpack.c.l.b16 %v125
    %v468 = vunpack.c.h.b16 %v125
    %v469 = vunpack.c.l.b16 %v126
    %v470 = vunpack.c.h.b16 %v126
    %v471 = vunpack.c.l.b16 %v127
    %v472 = vunpack.c.h.b16 %v127
    %v473 = vunpack.c.l.b16 %v128
    %v474 = vunpack.c.h.b16 %v128
    %v475 = vunpack.c.l.b16 %v129
    %v476 = vunpack.c.h.b16 %v129
    %v477 = vunpack.c.l.b16 %v130
    %v478 = vunpack.c.h.b16 %v130
    %v479 = vunpack.c.l.b16 %v131
    %v480 = vunpack.c.h.b16 %v131
    %v481 = vunpack.c.l.b16 %v132
    %v482 = vunpack.c.h.b16 %v132
    %v483 = vunpack.c.l.b16 %v133
    %v484 = vunpack.c.h.b16 %v133
    %v485 = vunpack.c.l.b16 %v134
    %v486 = vunpack.c.h.b16 %v134
    %v487 = vunpack.c.l.b16 %v135
    %v488 = vunpack.c.h.b16 %v135
    %v489 = vunpack.c.l.b16 %v136
    %v490 = vunpack.c.h.b16 %v136
    %v491 = vunpack.c.l.b16 %v137
    %v492 = vunpack.c.h.b16 %v137
    %v493 = vunpack.c.l.b16 %v138
    %v494 = vunpack.c.h.b16 %v138
    %v495 = vunpack.c.l.b16 %v139
    %v496 = vunpack.c.h.b16 %v139
    %v497 = vunpack.c.l.b16 %v140
    %v498 = vunpack.c.h.b16 %v140
    %v499 = vunpack.c.l.b16 %v141
    %v500 = vunpack.c.h.b16 %v141
    %v501 = vunpack.c.l.b16 %v142
    %v502 = vunpack.c.h.b16 %v142
    %v503 = vunpack.c.l.b16 %v143
    %v504 = vunpack.c.h.b16 %v143
    %v505 = vunpack.c.l.b16 %v144
    %v506 = vunpack.c.h.b16 %v144
    %v507 = vunpack.c.l.b16 %v145
    %v508 = vunpack.c.h.b16 %v145
    %v509 = vunpack.c.l.b16 %v146
    %v510 = vunpack.c.h.b16 %v146
    %v511 = vunpack.c.l.b16 %v147
    %v512 = vunpack.c.h.b16 %v147
    %v513 = vunpack.c.l.b16 %v148
    %v514 = vunpack.c.h.b16 %v148
    %v515 = vunpack.c.l.b16 %v149
    %v516 = vunpack.c.h.b16 %v149
    %v517 = vunpack.c.l.b16 %v150
    %v518 = vunpack.c.h.b16 %v150
    %v519 = vunpack.c.l.b16 %v151
    %v520 = vunpack.c.h.b16 %v151
    %v521 = vunpack.c.l.b16 %v152
    %v522 = vunpack.c.h.b16 %v152
    %v523 = vunpack.c.l.b16 %v153
    %v524 = vunpack.c.h.b16 %v153
    %v525 = vunpack.c.l.b16 %v154
    %v526 = vunpack.c.h.b16 %v154
    %v527 = vunpack.c.l.b16 %v155
    %v528 = vunpack.c.h.b16 %v155
    %v529 = vunpack.c.l.b16 %v156
    %v530 = vunpack.c.h.b16 %v156
    %v531 = vunpack.c.l.b16 %v157
    %v532 = vunpack.c.h.b16 %v157
    %v533 = vunpack.c.l.b16 %v158
    %v534 = vunpack.c.h.b16 %v158
    %v535 = vunpack.c.l.b16 %v159
    %v536 = vunpack.c.h.b16 %v159
    %v537 = vunpack.c.l.b16 %v160
    %v538 = vunpack.c.h.b16 %v160
    %v539 = vunpack.c.l.b16 %v161
    %v540 = vunpack.c.h.b16 %v161
    %v541 = vunpack.c.l.b16 %v162
    %v542 = vunpack.c.h.b16 %v162
    %v543 = vunpack.c.l.b16 %v163
    %v544 = vunpack.c.h.b16 %v163
    %v545 = vunpack.c.l.b16 %v164
    %v546 = vunpack.c.h.b16 %v164
    %v547 = vunpack.c.l.b16 %v165
    %v548 = vunpack.c.h.b16 %v165
    %v549 = vunpack.c.l.b16 %v166
    %v550 = vunpack.c.h.b16 %v166
    %v551 = vunpack.c.l.b16 %v167
    %v552 = vunpack.c.h.b16 %v167
    %v553 = vunpack.c.l.b16 %v168
    %v554 = vunpack.c.h.b16 %v168
    %v555 = vunpack.c.l.b16 %v169
    %v556 = vunpack.c.h.b16 %v169
    %v557 = vunpack.c.l.b16 %v170
    %v558 = vunpack.c.h.b16 %v170
    %v559 = vunpack.c.l.b16 %v171
    %v560 = vunpack.c.h.b16 %v171
    %v561 = vunpack.c.l.b16 %v172
    %v562 = vunpack.c.h.b16 %v172
    %v563 = vunpack.c.l.b16 %v173
    %v564 = vunpack.c.h.b16 %v173
    %v565 = vunpack.c.l.b16 %v174
    %v566 = vunpack.c.h.b16 %v174
    %v567 = vunpack.c.l.b16 %v175
    %v568 = vunpack.c.h.b16 %v175
    %v569 = vunpack.c.l.b16 %v176
    %v570 = vunpack.c.h.b16 %v176
    %v571 = vunpack.c.l.b16 %v177
    %v572 = vunpack.c.h.b16 %v177
    %v573 = vunpack.c.l.b16 %v178
    %v574 = vunpack.c.h.b16 %v178
    %v575 = vunpack.c.l.b16 %v179
    %v576 = vunpack.c.h.b16 %v179
    %v577 = vunpack.c.l.b16 %v180
    %v578 = vunpack.c.h.b16 %v180
    %v579 = vunpack.c.l.b16 %v181
    %v580 = vunpack.c.h.b16 %v181
    %v581 = vunpack.c.l.b16 %v182
    %v582 = vunpack.c.h.b16 %v182
    %v583 = vunpack.c.l.b16 %v183
    %v584 = vunpack.c.h.b16 %v183
    %v585 = vunpack.c.l.b16 %v184
    %v586 = vunpack.c.h.b16 %v184
    %v587 = vunpack.c.l.b16 %v185
    %v588 = vunpack.c.h.b16 %v185
    %v589 = vunpack.c.l.b16 %v186
    %v590 = vunpack.c.h.b16 %v186
    %v591 = vunpack.c.l.b16 %v187
    %v592 = vunpack.c.h.b16 %v187
    %v593 = vunpack.c.l.b16 %v188
    %v594 = vunpack.c.h.b16 %v188
    %v595 = vunpack.c.l.b16 %v189
    %v596 = vunpack.c.h.b16 %v189
    %v597 = vunpack.c.l.b16 %v190
    %v598 = vunpack.c.h.b16 %v190
    %v599 = vunpack.c.l.b16 %v191
    %v600 = vunpack.c.h.b16 %v191
    %v601 = vunpack.c.l.b16 %v192
    %v602 = vunpack.c.h.b16 %v192
    %v603 = vunpack.c.l.b16 %v193
    %v604 = vunpack.c.h.b16 %v193
    %v605 = vunpack.c.l.b16 %v194
    %v606 = vunpack.c.h.b16 %v194
    %v607 = vunpack.c.l.b16 %v195
    %v608 = vunpack.c.h.b16 %v195
    %v609 = vunpack.c.l.b16 %v196
    %v610 = vunpack.c.h.b16 %v196
    %v611 = vunpack.c.l.b16 %v197
    %v612 = vunpack.c.h.b16 %v197
    %v613 = vunpack.c.l.b16 %v198
    %v614 = vunpack.c.h.b16 %v198
    %v615 = vunpack.c.l.b16 %v199
    %v616 = vunpack.c.h.b16 %v199
    %v617 = vunpack.c.l.b16 %v200
    %v618 = vunpack.c.h.b16 %v200
    %v619 = vunpack.c.l.b16 %v201
    %v620 = vunpack.c.h.b16 %v201
    %v621 = vunpack.c.l.b16 %v202
    %v622 = vunpack.c.h.b16 %v202
    %v623 = vunpack.c.l.b16 %v203
    %v624 = vunpack.c.h.b16 %v203
    %v625 = vunpack.c.l.b16 %v204
    %v626 = vunpack.c.h.b16 %v204
    %v627 = vunpack.c.l.b16 %v205
    %v628 = vunpack.c.h.b16 %v205
    %v629 = vunpack.c.l.b16 %v206
    %v630 = vunpack.c.h.b16 %v206
    %v631 = vunpack.c.l.b16 %v207
    %v632 = vunpack.c.h.b16 %v207
    %v633 = vunpack.c.l.b16 %v208
    %v634 = vunpack.c.h.b16 %v208
    %v635 = vunpack.c.l.b16 %v209
    %v636 = vunpack.c.h.b16 %v209
    %v637 = vunpack.c.l.b16 %v210
    %v638 = vunpack.c.h.b16 %v210
    %v639 = vunpack.c.l.b16 %v211
    %v640 = vunpack.c.h.b16 %v211
    %v641 = vunpack.c.l.b16 %v212
    %v642 = vunpack.c.h.b16 %v212
    %v643 = vunpack.c.l.b16 %v213
    %v644 = vunpack.c.h.b16 %v213
    %v645 = vpack.c.b16 %v391, %v389
    %v646 = vpack.c.b16 %v392, %v390
    %v647 = vpack.c.b16 %v395, %v393
    %v648 = vpack.c.b16 %v396, %v394
    %v649 = vpack.c.b16 %v399, %v397
    %v650 = vpack.c.b16 %v400, %v398
    %v651 = vpack.c.b16 %v403, %v401
    %v652 = vpack.c.b16 %v404, %v402
    %v653 = vpack.c.b16 %v407, %v405
    %v654 = vpack.c.b16 %v408, %v406
    %v655 = vpack.c.b16 %v411, %v409
    %v656 = vpack.c.b16 %v412, %v410
    %v657 = vpack.c.b16 %v415, %v413
    %v658 = vpack.c.b16 %v416, %v414
    %v659 = vpack.c.b16 %v419, %v417
    %v660 = vpack.c.b16 %v420, %v418
    %v661 = vpack.c.b16 %v423, %v421
    %v662 = vpack.c.b16 %v424, %v422
    %v663 = vpack.c.b16 %v427, %v425
    %v664 = vpack.c.b16 %v428, %v426
    %v665 = vpack.c.b16 %v431, %v429
    %v666 = vpack.c.b16 %v432, %v430
    %v667 = vpack.c.b16 %v435, %v433
    %v668 = vpack.c.b16 %v436, %v434
    %v669 = vpack.c.b16 %v439, %v437
    %v670 = vpack.c.b16 %v440, %v438
    %v671 = vpack.c.b16 %v443, %v441
    %v672 = vpack.c.b16 %v444, %v442
    %v673 = vpack.c.b16 %v447, %v445
    %v674 = vpack.c.b16 %v448, %v446
    %v675 = vpack.c.b16 %v451, %v449
    %v676 = vpack.c.b16 %v452, %v450
    %v677 = vpack.c.b16 %v455, %v453
    %v678 = vpack.c.b16 %v456, %v454
    %v679 = vpack.c.b16 %v459, %v457
    %v680 = vpack.c.b16 %v460, %v458
    %v681 = vpack.c.b16 %v463, %v461
    %v682 = vpack.c.b16 %v464, %v462
    %v683 = vpack.c.b16 %v467, %v465
    %v684 = vpack.c.b16 %v468, %v466
    %v685 = vpack.c.b16 %v471, %v469
    %v686 = vpack.c.b16 %v472, %v470
    %v687 = vpack.c.b16 %v475, %v473
    %v688 = vpack.c.b16 %v476, %v474
    %v689 = vpack.c.b16 %v479, %v477
    %v690 = vpack.c.b16 %v480, %v478
    %v691 = vpack.c.b16 %v483, %v481
    %v692 = vpack.c.b16 %v484, %v482
    %v693 = vpack.c.b16 %v487, %v485
    %v694 = vpack.c.b16 %v488, %v486
    %v695 = vpack.c.b16 %v491, %v489
    %v696 = vpack.c.b16 %v492, %v490
    %v697 = vpack.c.b16 %v495, %v493
    %v698 = vpack.c.b16 %v496, %v494
    %v699 = vpack.c.b16 %v499, %v497
    %v700 = vpack.c.b16 %v500, %v498
    %v701 = vpack.c.b16 %v503, %v501
    %v702 = vpack.c.b16 %v504, %v502
    %v703 = vpack.c.b16 %v507, %v505
    %v704 = vpack.c.b16 %v508, %v506
    %v705 = vpack.c.b16 %v511, %v509
    %v706 = vpack.c.b16 %v512, %v510
    %v707 = vpack.c.b16 %v515, %v513
    %v708 = vpack.c.b16 %v516, %v514
    %v709 = vpack.c.b16 %v519, %v517
    %v710 = vpack.c.b16 %v520, %v518
    %v711 = vpack.c.b16 %v523, %v521
    %v712 = vpack.c.b16 %v524, %v522
    %v713 = vpack.c.b16 %v527, %v525
    %v714 = vpack.c.b16 %v528, %v526
    %v715 = vpack.c.b16 %v531, %v529
    %v716 = vpack.c.b16 %v532, %v530
    %v717 = vpack.c.b16 %v535, %v533
    %v718 = vpack.c.b16 %v536, %v534
    %v719 = vpack.c.b16 %v539, %v537
    %v720 = vpack.c.b16 %v540, %v538
    %v721 = vpack.c.b16 %v543, %v541
    %v722 = vpack.c.b16 %v544, %v542
    %v723 = vpack.c.b16 %v547, %v545
    %v724 = vpack.c.b16 %v548, %v546
    %v725 = vpack.c.b16 %v551, %v549
    %v726 = vpack.c.b16 %v552, %v550
    %v727 = vpack.c.b16 %v555, %v553
    %v728 = vpack.c.b16 %v556, %v554
    %v729 = vpack.c.b16 %v559, %v557
    %v730 = vpack.c.b16 %v560, %v558
    %v731 = vpack.c.b16 %v563, %v561
    %v732 = vpack.c.b16 %v564, %v562
    %v733 = vpack.c.b16 %v567, %v565
    %v734 = vpack.c.b16 %v568, %v566
    %v735 = vpack.c.b16 %v571, %v569
    %v736 = vpack.c.b16 %v572, %v570
    %v737 = vpack.c.b16 %v575, %v573
    %v738 = vpack.c.b16 %v576, %v574
    %v739 = vpack.c.b16 %v579, %v577
    %v740 = vpack.c.b16 %v580, %v578
    %v741 = vpack.c.b16 %v583, %v581
    %v742 = vpack.c.b16 %v584, %v582
    %v743 = vpack.c.b16 %v587, %v585
    %v744 = vpack.c.b16 %v588, %v586
    %v745 = vpack.c.b16 %v591, %v589
    %v746 = vpack.c.b16 %v592, %v590
    %v747 = vpack.c.b16 %v595, %v593
    %v748 = vpack.c.b16 %v596, %v594
    %v749 = vpack.c.b16 %v599, %v597
    %v750 = vpack.c.b16 %v600, %v598
    %v751 = vpack.c.b16 %v603, %v601
    %v752 = vpack.c.b16 %v604, %v602
    %v753 = vpack.c.b16 %v607, %v605
    %v754 = vpack.c.b16 %v608, %v606
    %v755 = vpack.c.b16 %v611, %v609
    %v756 = vpack.c.b16 %v612, %v610
    %v757 = vpack.c.b16 %v615, %v613
    %v758 = vpack.c.b16 %v616, %v614
    %v759 = vpack.c.b16 %v619, %v617
    %v760 = vpack.c.b16 %v620, %v618
    %v761 = vpack.c.b16 %v623, %v621
    %v762 = vpack.c.b16 %v624, %v622
    %v763 = vpack.c.b16 %v627, %v625
    %v764 = vpack.c.b16 %v628, %v626
    %v765 = vpack.c.b16 %v631, %v629
    %v766 = vpack.c.b16 %v632, %v630
    %v767 = vpack.c.b16 %v635, %v633
    %v768 = vpack.c.b16 %v636, %v634
    %v769 = vpack.c.b16 %v639, %v637
    %v770 = vpack.c.b16 %v640, %v638
    %v771 = vpack.c.b16 %v643, %v641
    %v772 = vpack.c.b16 %v644, %v642
    %901 = vmatprep.subr.bf16.mxu0 %v660
    %902 = vmatpush1.bf16.msra.mxu0 %v659
    %903 = vmatprep.subr.bf16.mxu0 %v658
    %904 = vmatpush1.bf16.msra.mxu0 %v657
    %905 = vmatprep.subr.bf16.mxu0 %v656
    %906 = vmatpush1.bf16.msra.mxu0 %v655
    %907 = vmatprep.subr.bf16.mxu0 %v654
    %908 = vmatpush1.bf16.msra.mxu0 %v653
    %909 = vmatprep.subr.bf16.mxu0 %v652
    %910 = vmatpush1.bf16.msra.mxu0 %v651
    %911 = vmatprep.subr.bf16.mxu0 %v650
    %912 = vmatpush1.bf16.msra.mxu0 %v649
    %913 = vmatprep.subr.bf16.mxu0 %v648
    %914 = vmatpush1.bf16.msra.mxu0 %v647
    %915 = vmatprep.subr.bf16.mxu0 %v646
    %916 = vmatpush1.bf16.msra.mxu0 %v645
    %917 = vmatprep.subr.bf16.mxu0 %v676
    %918 = vmatpush2.bf16.msra.mxu0 %v675
    %919 = vmatprep.subr.bf16.mxu0 %v674
    %920 = vmatpush2.bf16.msra.mxu0 %v673
    %921 = vmatprep.subr.bf16.mxu0 %v672
    %922 = vmatpush2.bf16.msra.mxu0 %v671
    %923 = vmatprep.subr.bf16.mxu0 %v670
    %924 = vmatpush2.bf16.msra.mxu0 %v669
    %925 = vmatprep.subr.bf16.mxu0 %v668
    %926 = vmatpush2.bf16.msra.mxu0 %v667
    %927 = vmatprep.subr.bf16.mxu0 %v666
    %928 = vmatpush2.bf16.msra.mxu0 %v665
    %929 = vmatprep.subr.bf16.mxu0 %v664
    %930 = vmatpush2.bf16.msra.mxu0 %v663
    %931 = vmatprep.subr.bf16.mxu0 %v662
    %932 = vmatpush2.bf16.msra.mxu0 %v661
    %933 = vmatprep.mubr.bf16.mxu0 %v243
    %934 = vmatmul.mubr.bf16.gmra.mxu0 %v242
    %v935 = vpop.f32.mrf.mxu0
    %v936 = vadd.f32 %v254, %v935
    %v937 = vpop.f32.mrf.mxu0
    %v938 = vadd.f32 %v258, %v937
    %v939 = vpop.f32.mrf.mxu0
    %v940 = vpop.f32.mrf.mxu0
    %941 = vdwg.mxu0
    %942 = vmatprep.subr.bf16.mxu0 %v692
    %943 = vmatpush1.bf16.msra.mxu0 %v691
    %944 = vmatprep.subr.bf16.mxu0 %v690
    %945 = vmatpush1.bf16.msra.mxu0 %v689
    %946 = vmatprep.subr.bf16.mxu0 %v688
    %947 = vmatpush1.bf16.msra.mxu0 %v687
    %948 = vmatprep.subr.bf16.mxu0 %v686
    %949 = vmatpush1.bf16.msra.mxu0 %v685
    %950 = vmatprep.subr.bf16.mxu0 %v684
    %951 = vmatpush1.bf16.msra.mxu0 %v683
    %952 = vmatprep.subr.bf16.mxu0 %v682
    %953 = vmatpush1.bf16.msra.mxu0 %v681
    %954 = vmatprep.subr.bf16.mxu0 %v680
    %955 = vmatpush1.bf16.msra.mxu0 %v679
    %956 = vmatprep.subr.bf16.mxu0 %v678
    %957 = vmatpush1.bf16.msra.mxu0 %v677
    %958 = vmatprep.subr.bf16.mxu0 %v708
    %959 = vmatpush2.bf16.msra.mxu0 %v707
    %960 = vmatprep.subr.bf16.mxu0 %v706
    %961 = vmatpush2.bf16.msra.mxu0 %v705
    %962 = vmatprep.subr.bf16.mxu0 %v704
    %963 = vmatpush2.bf16.msra.mxu0 %v703
    %964 = vmatprep.subr.bf16.mxu0 %v702
    %965 = vmatpush2.bf16.msra.mxu0 %v701
    %966 = vmatprep.subr.bf16.mxu0 %v700
    %967 = vmatpush2.bf16.msra.mxu0 %v699
    %968 = vmatprep.subr.bf16.mxu0 %v698
    %969 = vmatpush2.bf16.msra.mxu0 %v697
    %970 = vmatprep.subr.bf16.mxu0 %v696
    %971 = vmatpush2.bf16.msra.mxu0 %v695
    %972 = vmatprep.subr.bf16.mxu0 %v694
    %973 = vmatpush2.bf16.msra.mxu0 %v693
    %974 = vmatprep.mubr.bf16.mxu0 %v245
    %975 = vmatmul.mubr.bf16.gmra.mxu0 %v244
    %v976 = vpop.f32.mrf.mxu0
    %v977 = vadd.f32 %v936, %v976
    %v978 = vpop.f32.mrf.mxu0
    %v979 = vadd.f32 %v938, %v978
    %v980 = vpop.f32.mrf.mxu0
    %v981 = vpop.f32.mrf.mxu0
    %982 = vdwg.mxu0
    %983 = vmatprep.subr.bf16.mxu0 %v724
    %984 = vmatpush1.bf16.msra.mxu0 %v723
    %985 = vmatprep.subr.bf16.mxu0 %v722
    %986 = vmatpush1.bf16.msra.mxu0 %v721
    %987 = vmatprep.subr.bf16.mxu0 %v720
    %988 = vmatpush1.bf16.msra.mxu0 %v719
    %989 = vmatprep.subr.bf16.mxu0 %v718
    %990 = vmatpush1.bf16.msra.mxu0 %v717
    %991 = vmatprep.subr.bf16.mxu0 %v716
    %992 = vmatpush1.bf16.msra.mxu0 %v715
    %993 = vmatprep.subr.bf16.mxu0 %v714
    %994 = vmatpush1.bf16.msra.mxu0 %v713
    %995 = vmatprep.subr.bf16.mxu0 %v712
    %996 = vmatpush1.bf16.msra.mxu0 %v711
    %997 = vmatprep.subr.bf16.mxu0 %v710
    %998 = vmatpush1.bf16.msra.mxu0 %v709
    %999 = vmatprep.subr.bf16.mxu0 %v740
    %1000 = vmatpush2.bf16.msra.mxu0 %v739
    %1001 = vmatprep.subr.bf16.mxu0 %v738
    %1002 = vmatpush2.bf16.msra.mxu0 %v737
    %1003 = vmatprep.subr.bf16.mxu0 %v736
    %1004 = vmatpush2.bf16.msra.mxu0 %v735
    %1005 = vmatprep.subr.bf16.mxu0 %v734
    %1006 = vmatpush2.bf16.msra.mxu0 %v733
    %1007 = vmatprep.subr.bf16.mxu0 %v732
    %1008 = vmatpush2.bf16.msra.mxu0 %v731
    %1009 = vmatprep.subr.bf16.mxu0 %v730
    %1010 = vmatpush2.bf16.msra.mxu0 %v729
    %1011 = vmatprep.subr.bf16.mxu0 %v728
    %1012 = vmatpush2.bf16.msra.mxu0 %v727
    %1013 = vmatprep.subr.bf16.mxu0 %v726
    %1014 = vmatpush2.bf16.msra.mxu0 %v725
    %1015 = vmatprep.mubr.bf16.mxu0 %v247
    %1016 = vmatmul.mubr.bf16.gmra.mxu0 %v246
    %v1017 = vpop.f32.mrf.mxu0
    %v1018 = vadd.f32 %v977, %v1017
    %v1019 = vpop.f32.mrf.mxu0
    %v1020 = vadd.f32 %v979, %v1019
    %v1021 = vpop.f32.mrf.mxu0
    %v1022 = vpop.f32.mrf.mxu0
    %1023 = vdwg.mxu0
    %1024 = vmatprep.subr.bf16.mxu0 %v756
    %1025 = vmatpush1.bf16.msra.mxu0 %v755
    %1026 = vmatprep.subr.bf16.mxu0 %v754
    %1027 = vmatpush1.bf16.msra.mxu0 %v753
    %1028 = vmatprep.subr.bf16.mxu0 %v752
    %1029 = vmatpush1.bf16.msra.mxu0 %v751
    %1030 = vmatprep.subr.bf16.mxu0 %v750
    %1031 = vmatpush1.bf16.msra.mxu0 %v749
    %1032 = vmatprep.subr.bf16.mxu0 %v748
    %1033 = vmatpush1.bf16.msra.mxu0 %v747
    %1034 = vmatprep.subr.bf16.mxu0 %v746
    %1035 = vmatpush1.bf16.msra.mxu0 %v745
    %1036 = vmatprep.subr.bf16.mxu0 %v744
    %1037 = vmatpush1.bf16.msra.mxu0 %v743
    %1038 = vmatprep.subr.bf16.mxu0 %v742
    %1039 = vmatpush1.bf16.msra.mxu0 %v741
    %1040 = vmatprep.subr.bf16.mxu0 %v772
    %1041 = vmatpush2.bf16.msra.mxu0 %v771
    %1042 = vmatprep.subr.bf16.mxu0 %v770
    %1043 = vmatpush2.bf16.msra.mxu0 %v769
    %1044 = vmatprep.subr.bf16.mxu0 %v768
    %1045 = vmatpush2.bf16.msra.mxu0 %v767
    %1046 = vmatprep.subr.bf16.mxu0 %v766
    %1047 = vmatpush2.bf16.msra.mxu0 %v765
    %1048 = vmatprep.subr.bf16.mxu0 %v764
    %1049 = vmatpush2.bf16.msra.mxu0 %v763
    %1050 = vmatprep.subr.bf16.mxu0 %v762
    %1051 = vmatpush2.bf16.msra.mxu0 %v761
    %1052 = vmatprep.subr.bf16.mxu0 %v760
    %1053 = vmatpush2.bf16.msra.mxu0 %v759
    %1054 = vmatprep.subr.bf16.mxu0 %v758
    %1055 = vmatpush2.bf16.msra.mxu0 %v757
    %1056 = vmatprep.mubr.bf16.mxu0 %v249
    %1057 = vmatmul.mubr.bf16.gmra.mxu0 %v248
    %v1058 = vpop.f32.mrf.mxu0
    %v1059 = vadd.f32 %v1018, %v1058
    %v1060 = vpop.f32.mrf.mxu0
    %v1061 = vadd.f32 %v1020, %v1060
    %v1062 = vpop.f32.mrf.mxu0
    %v1063 = vpop.f32.mrf.mxu0
    %1064 = vdwg.mxu0
    %v1065 = vmax.f32 %v1059, 0.0
    %v1066 = vmax.f32 %v1061, 0.0
    %v1067 = vpack.c.bf16 %v1065, %v1065
    %v1068 = vpack.c.bf16 %v1066, %v1066
    %v1069 = vld [vmem:[#allocation7] sm:$0xf]
    %v1070 = vld [vmem:[#allocation7 + $0x4] sm:$0xf]
    %v1071 = vld [vmem:[#allocation7 + $0x8] sm:$0xf]
    %v1072 = vld [vmem:[#allocation7 + $0xc] sm:$0xf]
    %v1073 = vld [vmem:[#allocation7 + $0x10] sm:$0xf]
    %v1074 = vld [vmem:[#allocation7 + $0x14] sm:$0xf]
    %v1075 = vld [vmem:[#allocation7 + $0x18] sm:$0xf]
    %v1076 = vld [vmem:[#allocation7 + $0x1c] sm:$0xf]
    %v1077 = vld [vmem:[#allocation7 + $0x20] sm:$0xf]
    %v1078 = vld [vmem:[#allocation7 + $0x24] sm:$0xf]
    %v1079 = vld [vmem:[#allocation7 + $0x28] sm:$0xf]
    %v1080 = vld [vmem:[#allocation7 + $0x2c] sm:$0xf]
    %v1081 = vld [vmem:[#allocation7 + $0x30] sm:$0xf]
    %v1082 = vld [vmem:[#allocation7 + $0x34] sm:$0xf]
    %v1083 = vld [vmem:[#allocation7 + $0x38] sm:$0xf]
    %v1084 = vld [vmem:[#allocation7 + $0x3c] sm:$0xf]
    %v1085 = vld [vmem:[#allocation7 + $0x40] sm:$0xf]
    %v1086 = vld [vmem:[#allocation7 + $0x44] sm:$0xf]
    %v1087 = vld [vmem:[#allocation7 + $0x48] sm:$0xf]
    %v1088 = vld [vmem:[#allocation7 + $0x4c] sm:$0xf]
    %v1089 = vld [vmem:[#allocation7 + $0x50] sm:$0xf]
    %v1090 = vld [vmem:[#allocation7 + $0x54] sm:$0xf]
    %v1091 = vld [vmem:[#allocation7 + $0x58] sm:$0xf]
    %v1092 = vld [vmem:[#allocation7 + $0x5c] sm:$0xf]
    %v1093 = vld [vmem:[#allocation7 + $0x60] sm:$0xf]
    %v1094 = vld [vmem:[#allocation7 + $0x64] sm:$0xf]
    %v1095 = vld [vmem:[#allocation7 + $0x68] sm:$0xf]
    %v1096 = vld [vmem:[#allocation7 + $0x6c] sm:$0xf]
    %v1097 = vld [vmem:[#allocation7 + $0x70] sm:$0xf]
    %v1098 = vld [vmem:[#allocation7 + $0x74] sm:$0xf]
    %v1099 = vld [vmem:[#allocation7 + $0x78] sm:$0xf]
    %v1100 = vld [vmem:[#allocation7 + $0x7c] sm:$0xf]
    %v1102 = vlaneseq
    %v1103 = vshrl.u32 %v1102, 7
    %v1104 = vsub.s32 0, %v1103
    %v1105 = vrot.slane %v231, %v1104
    %v1139 = vunpack.c.l.b16 %v1069
    %v1140 = vunpack.c.l.b16 %v1070
    %v1141 = vunpack.c.l.b16 %v1071
    %v1142 = vunpack.c.l.b16 %v1072
    %v1143 = vunpack.c.l.b16 %v1073
    %v1144 = vunpack.c.l.b16 %v1074
    %v1145 = vunpack.c.l.b16 %v1075
    %v1146 = vunpack.c.l.b16 %v1076
    %v1147 = vunpack.c.l.b16 %v1077
    %v1148 = vunpack.c.l.b16 %v1078
    %v1149 = vunpack.c.l.b16 %v1079
    %v1150 = vunpack.c.l.b16 %v1080
    %v1151 = vunpack.c.l.b16 %v1081
    %v1152 = vunpack.c.l.b16 %v1082
    %v1153 = vunpack.c.l.b16 %v1083
    %v1154 = vunpack.c.l.b16 %v1084
    %v1155 = vunpack.c.l.b16 %v1085
    %v1156 = vunpack.c.l.b16 %v1086
    %v1157 = vunpack.c.l.b16 %v1087
    %v1158 = vunpack.c.l.b16 %v1088
    %v1159 = vunpack.c.l.b16 %v1089
    %v1160 = vunpack.c.l.b16 %v1090
    %v1161 = vunpack.c.l.b16 %v1091
    %v1162 = vunpack.c.l.b16 %v1092
    %v1163 = vunpack.c.l.b16 %v1093
    %v1164 = vunpack.c.l.b16 %v1094
    %v1165 = vunpack.c.l.b16 %v1095
    %v1166 = vunpack.c.l.b16 %v1096
    %v1167 = vunpack.c.l.b16 %v1097
    %v1168 = vunpack.c.l.b16 %v1098
    %v1169 = vunpack.c.l.b16 %v1099
    %v1170 = vunpack.c.l.b16 %v1100
    %v1171 = vpack.c.b16 %v1140, %v1139
    %v1172 = vpack.c.b16 %v1142, %v1141
    %v1173 = vpack.c.b16 %v1144, %v1143
    %v1174 = vpack.c.b16 %v1146, %v1145
    %v1175 = vpack.c.b16 %v1148, %v1147
    %v1176 = vpack.c.b16 %v1150, %v1149
    %v1177 = vpack.c.b16 %v1152, %v1151
    %v1178 = vpack.c.b16 %v1154, %v1153
    %v1179 = vpack.c.b16 %v1156, %v1155
    %v1180 = vpack.c.b16 %v1158, %v1157
    %v1181 = vpack.c.b16 %v1160, %v1159
    %v1182 = vpack.c.b16 %v1162, %v1161
    %v1183 = vpack.c.b16 %v1164, %v1163
    %v1184 = vpack.c.b16 %v1166, %v1165
    %v1185 = vpack.c.b16 %v1168, %v1167
    %v1186 = vpack.c.b16 %v1170, %v1169
    %1203 = vmatprep.subr.bf16.mxu0 0
    %1204 = vmatpush1.bf16.msra.mxu0 %v1178
    %1205 = vmatprep.subr.bf16.mxu0 0
    %1206 = vmatpush1.bf16.msra.mxu0 %v1177
    %1207 = vmatprep.subr.bf16.mxu0 0
    %1208 = vmatpush1.bf16.msra.mxu0 %v1176
    %1209 = vmatprep.subr.bf16.mxu0 0
    %1210 = vmatpush1.bf16.msra.mxu0 %v1175
    %1211 = vmatprep.subr.bf16.mxu0 0
    %1212 = vmatpush1.bf16.msra.mxu0 %v1174
    %1213 = vmatprep.subr.bf16.mxu0 0
    %1214 = vmatpush1.bf16.msra.mxu0 %v1173
    %1215 = vmatprep.subr.bf16.mxu0 0
    %1216 = vmatpush1.bf16.msra.mxu0 %v1172
    %1217 = vmatprep.subr.bf16.mxu0 0
    %1218 = vmatpush1.bf16.msra.mxu0 %v1171
    %1219 = vmatprep.subr.bf16.mxu0 0
    %1220 = vmatpush2.bf16.msra.mxu0 %v1186
    %1221 = vmatprep.subr.bf16.mxu0 0
    %1222 = vmatpush2.bf16.msra.mxu0 %v1185
    %1223 = vmatprep.subr.bf16.mxu0 0
    %1224 = vmatpush2.bf16.msra.mxu0 %v1184
    %1225 = vmatprep.subr.bf16.mxu0 0
    %1226 = vmatpush2.bf16.msra.mxu0 %v1183
    %1227 = vmatprep.subr.bf16.mxu0 0
    %1228 = vmatpush2.bf16.msra.mxu0 %v1182
    %1229 = vmatprep.subr.bf16.mxu0 0
    %1230 = vmatpush2.bf16.msra.mxu0 %v1181
    %1231 = vmatprep.subr.bf16.mxu0 0
    %1232 = vmatpush2.bf16.msra.mxu0 %v1180
    %1233 = vmatprep.subr.bf16.mxu0 0
    %1234 = vmatpush2.bf16.msra.mxu0 %v1179
    %1235 = vmatprep.mubr.bf16.mxu0 %v1068
    %1236 = vmatmul.mubr.bf16.gmra.mxu0 %v1067
    %v1237 = vpop.f32.mrf.mxu0
    %v1238 = vadd.f32 %v1105, %v1237
    %v1239 = vpop.f32.mrf.mxu0
    %v1240 = vpop.f32.mrf.mxu0
    %v1241 = vpop.f32.mrf.mxu0
    %1242 = vdwg.mxu0
    %v1243 = vmax.f32 %v1238, 0.0
    %v1244 = vpack.c.bf16 %v1243, %v1243
    %v1246 = vlaneseq
    %v1247 = vshrl.u32 %v1246, 7
    %v1248 = vsub.s32 0, %v1247
    %v1249 = vrot.slane %v232, %v1248
    %v1250 = vlaneseq
    %v1251 = vshrl.u32 %v1250, 7
    %v1252 = vsub.s32 1, %v1251
    %v1253 = vrot.slane %v232, %v1252
    %v1272 = vunpack.c.l.b16 %v214
    %v1273 = vunpack.c.h.b16 %v214
    %v1274 = vunpack.c.l.b16 %v215
    %v1275 = vunpack.c.h.b16 %v215
    %v1276 = vunpack.c.l.b16 %v216
    %v1277 = vunpack.c.h.b16 %v216
    %v1278 = vunpack.c.l.b16 %v217
    %v1279 = vunpack.c.h.b16 %v217
    %v1280 = vunpack.c.l.b16 %v218
    %v1281 = vunpack.c.h.b16 %v218
    %v1282 = vunpack.c.l.b16 %v219
    %v1283 = vunpack.c.h.b16 %v219
    %v1284 = vunpack.c.l.b16 %v220
    %v1285 = vunpack.c.h.b16 %v220
    %v1286 = vunpack.c.l.b16 %v221
    %v1287 = vunpack.c.h.b16 %v221
    %v1288 = vunpack.c.l.b16 %v222
    %v1289 = vunpack.c.h.b16 %v222
    %v1290 = vunpack.c.l.b16 %v223
    %v1291 = vunpack.c.h.b16 %v223
    %v1292 = vunpack.c.l.b16 %v224
    %v1293 = vunpack.c.h.b16 %v224
    %v1294 = vunpack.c.l.b16 %v225
    %v1295 = vunpack.c.h.b16 %v225
    %v1296 = vunpack.c.l.b16 %v226
    %v1297 = vunpack.c.h.b16 %v226
    %v1298 = vunpack.c.l.b16 %v227
    %v1299 = vunpack.c.h.b16 %v227
    %v1300 = vunpack.c.l.b16 %v228
    %v1301 = vunpack.c.h.b16 %v228
    %v1302 = vunpack.c.l.b16 %v229
    %v1303 = vunpack.c.h.b16 %v229
    %v1304 = vpack.c.b16 %v1274, %v1272
    %v1305 = vpack.c.b16 %v1275, %v1273
    %v1306 = vpack.c.b16 %v1278, %v1276
    %v1307 = vpack.c.b16 %v1279, %v1277
    %v1308 = vpack.c.b16 %v1282, %v1280
    %v1309 = vpack.c.b16 %v1283, %v1281
    %v1310 = vpack.c.b16 %v1286, %v1284
    %v1311 = vpack.c.b16 %v1287, %v1285
    %v1312 = vpack.c.b16 %v1290, %v1288
    %v1313 = vpack.c.b16 %v1291, %v1289
    %v1314 = vpack.c.b16 %v1294, %v1292
    %v1315 = vpack.c.b16 %v1295, %v1293
    %v1316 = vpack.c.b16 %v1298, %v1296
    %v1317 = vpack.c.b16 %v1299, %v1297
    %v1318 = vpack.c.b16 %v1302, %v1300
    %v1319 = vpack.c.b16 %v1303, %v1301
    %1336 = vmatprep.subr.bf16.mxu0 %v1319
    %1337 = vmatpush1.bf16.msra.mxu0 %v1318
    %1338 = vmatprep.subr.bf16.mxu0 %v1317
    %1339 = vmatpush1.bf16.msra.mxu0 %v1316
    %1340 = vmatprep.subr.bf16.mxu0 %v1315
    %1341 = vmatpush1.bf16.msra.mxu0 %v1314
    %1342 = vmatprep.subr.bf16.mxu0 %v1313
    %1343 = vmatpush1.bf16.msra.mxu0 %v1312
    %1344 = vmatprep.subr.bf16.mxu0 %v1311
    %1345 = vmatpush1.bf16.msra.mxu0 %v1310
    %1346 = vmatprep.subr.bf16.mxu0 %v1309
    %1347 = vmatpush1.bf16.msra.mxu0 %v1308
    %1348 = vmatprep.subr.bf16.mxu0 %v1307
    %1349 = vmatpush1.bf16.msra.mxu0 %v1306
    %1350 = vmatprep.subr.bf16.mxu0 %v1305
    %1351 = vmatpush1.bf16.msra.mxu0 %v1304
    %1352 = vmatprep.subr.bf16.mxu0 0
    %1353 = vmatpush2.bf16.msra.mxu0 0
    %1354 = vmatprep.subr.bf16.mxu0 0
    %1355 = vmatpush2.bf16.msra.mxu0 0
    %1356 = vmatprep.subr.bf16.mxu0 0
    %1357 = vmatpush2.bf16.msra.mxu0 0
    %1358 = vmatprep.subr.bf16.mxu0 0
    %1359 = vmatpush2.bf16.msra.mxu0 0
    %1360 = vmatprep.subr.bf16.mxu0 0
    %1361 = vmatpush2.bf16.msra.mxu0 0
    %1362 = vmatprep.subr.bf16.mxu0 0
    %1363 = vmatpush2.bf16.msra.mxu0 0
    %1364 = vmatprep.subr.bf16.mxu0 0
    %1365 = vmatpush2.bf16.msra.mxu0 0
    %1366 = vmatprep.subr.bf16.mxu0 0
    %1367 = vmatpush2.bf16.msra.mxu0 0
    %1368 = vmatprep.mubr.bf16.mxu0 0
    %1369 = vmatmul.mubr.bf16.gmra.mxu0 %v1244
    %v1370 = vpop.f32.mrf.mxu0
    %v1371 = vadd.f32 %v1249, %v1370
    %v1372 = vpop.f32.mrf.mxu0
    %v1373 = vadd.f32 %v1253, %v1372
    %v1374 = vpop.f32.mrf.mxu0
    %v1375 = vpop.f32.mrf.mxu0
    %1376 = vdwg.mxu0
    %v1377 = vmax.f32 %v1371, 0.0
    %v1378 = vmax.f32 %v1373, 0.0
    %v1379 = vpack.c.bf16 %v1377, %v1377
    %v1380 = vpack.c.bf16 %v1378, %v1378
    %v1381 = vld [vmem:[#allocation8] sm:$0xff]
    %v1382 = vld [vmem:[#allocation8 + $0x8] sm:$0xff]
    %v1383 = vld [vmem:[#allocation8 + $0x10] sm:$0xff]
    %v1384 = vld [vmem:[#allocation8 + $0x18] sm:$0xff]
    %v1385 = vld [vmem:[#allocation8 + $0x20] sm:$0xff]
    %v1386 = vld [vmem:[#allocation8 + $0x28] sm:$0xff]
    %v1387 = vld [vmem:[#allocation8 + $0x30] sm:$0xff]
    %v1388 = vld [vmem:[#allocation8 + $0x38] sm:$0xff]
    %v1389 = vld [vmem:[#allocation8 + $0x40] sm:$0xff]
    %v1390 = vld [vmem:[#allocation8 + $0x48] sm:$0xff]
    %v1391 = vld [vmem:[#allocation8 + $0x50] sm:$0xff]
    %v1392 = vld [vmem:[#allocation8 + $0x58] sm:$0xff]
    %v1393 = vld [vmem:[#allocation8 + $0x60] sm:$0xff]
    %v1394 = vld [vmem:[#allocation8 + $0x68] sm:$0xff]
    %v1395 = vld [vmem:[#allocation8 + $0x70] sm:$0xff]
    %v1396 = vld [vmem:[#allocation8 + $0x78] sm:$0xff]
    %v1397 = vld [vmem:[#allocation8 + $0x80] sm:$0xff]
    %v1398 = vld [vmem:[#allocation8 + $0x88] sm:$0xff]
    %v1399 = vld [vmem:[#allocation8 + $0x90] sm:$0xff]
    %v1400 = vld [vmem:[#allocation8 + $0x98] sm:$0xff]
    %v1401 = vld [vmem:[#allocation8 + $0xa0] sm:$0xff]
    %v1402 = vld [vmem:[#allocation8 + $0xa8] sm:$0xff]
    %v1403 = vld [vmem:[#allocation8 + $0xb0] sm:$0xff]
    %v1404 = vld [vmem:[#allocation8 + $0xb8] sm:$0xff]
    %v1405 = vld [vmem:[#allocation8 + $0xc0] sm:$0xff]
    %v1406 = vld [vmem:[#allocation8 + $0xc8] sm:$0xff]
    %v1407 = vld [vmem:[#allocation8 + $0xd0] sm:$0xff]
    %v1408 = vld [vmem:[#allocation8 + $0xd8] sm:$0xff]
    %v1409 = vld [vmem:[#allocation8 + $0xe0] sm:$0xff]
    %v1410 = vld [vmem:[#allocation8 + $0xe8] sm:$0xff]
    %v1411 = vld [vmem:[#allocation8 + $0xf0] sm:$0xff]
    %v1412 = vld [vmem:[#allocation8 + $0xf8] sm:$0xff]
    %v1413 = vld [vmem:[#allocation8 + $0x100] sm:$0xff]
    %v1414 = vld [vmem:[#allocation8 + $0x108] sm:$0xff]
    %v1415 = vld [vmem:[#allocation8 + $0x110] sm:$0xff]
    %v1416 = vld [vmem:[#allocation8 + $0x118] sm:$0xff]
    %v1417 = vld [vmem:[#allocation8 + $0x120] sm:$0xff]
    %v1418 = vld [vmem:[#allocation8 + $0x128] sm:$0xff]
    %v1419 = vld [vmem:[#allocation8 + $0x130] sm:$0xff]
    %v1420 = vld [vmem:[#allocation8 + $0x138] sm:$0xff]
    %v1421 = vld [vmem:[#allocation8 + $0x140] sm:$0xff]
    %v1422 = vld [vmem:[#allocation8 + $0x148] sm:$0xff]
    %v1423 = vld [vmem:[#allocation8 + $0x150] sm:$0xff]
    %v1424 = vld [vmem:[#allocation8 + $0x158] sm:$0xff]
    %v1425 = vld [vmem:[#allocation8 + $0x160] sm:$0xff]
    %v1426 = vld [vmem:[#allocation8 + $0x168] sm:$0xff]
    %v1427 = vld [vmem:[#allocation8 + $0x170] sm:$0xff]
    %v1428 = vld [vmem:[#allocation8 + $0x178] sm:$0xff]
    %v1429 = vld [vmem:[#allocation8 + $0x180] sm:$0xff]
    %v1430 = vld [vmem:[#allocation8 + $0x188] sm:$0xff]
    %v1431 = vld [vmem:[#allocation8 + $0x190] sm:$0xff]
    %v1432 = vld [vmem:[#allocation8 + $0x198] sm:$0xff]
    %v1433 = vld [vmem:[#allocation8 + $0x1a0] sm:$0xff]
    %v1434 = vld [vmem:[#allocation8 + $0x1a8] sm:$0xff]
    %v1435 = vld [vmem:[#allocation8 + $0x1b0] sm:$0xff]
    %v1436 = vld [vmem:[#allocation8 + $0x1b8] sm:$0xff]
    %v1437 = vld [vmem:[#allocation8 + $0x1c0] sm:$0xff]
    %v1438 = vld [vmem:[#allocation8 + $0x1c8] sm:$0xff]
    %v1439 = vld [vmem:[#allocation8 + $0x1d0] sm:$0xff]
    %v1440 = vld [vmem:[#allocation8 + $0x1d8] sm:$0xff]
    %v1441 = vld [vmem:[#allocation8 + $0x1e0] sm:$0xff]
    %v1442 = vld [vmem:[#allocation8 + $0x1e8] sm:$0xff]
    %v1443 = vld [vmem:[#allocation8 + $0x1f0] sm:$0xff]
    %v1444 = vld [vmem:[#allocation8 + $0x1f8] sm:$0xff]
    %v1445 = vld [vmem:[#allocation8 + $0x200] sm:$0xff]
    %v1446 = vld [vmem:[#allocation8 + $0x208] sm:$0xff]
    %v1447 = vld [vmem:[#allocation8 + $0x210] sm:$0xff]
    %v1448 = vld [vmem:[#allocation8 + $0x218] sm:$0xff]
    %v1449 = vld [vmem:[#allocation8 + $0x220] sm:$0xff]
    %v1450 = vld [vmem:[#allocation8 + $0x228] sm:$0xff]
    %v1451 = vld [vmem:[#allocation8 + $0x230] sm:$0xff]
    %v1452 = vld [vmem:[#allocation8 + $0x238] sm:$0xff]
    %v1453 = vld [vmem:[#allocation8 + $0x240] sm:$0xff]
    %v1454 = vld [vmem:[#allocation8 + $0x248] sm:$0xff]
    %v1455 = vld [vmem:[#allocation8 + $0x250] sm:$0xff]
    %v1456 = vld [vmem:[#allocation8 + $0x258] sm:$0xff]
    %v1457 = vld [vmem:[#allocation8 + $0x260] sm:$0xff]
    %v1458 = vld [vmem:[#allocation8 + $0x268] sm:$0xff]
    %v1459 = vld [vmem:[#allocation8 + $0x270] sm:$0xff]
    %v1460 = vld [vmem:[#allocation8 + $0x278] sm:$0xff]
    %v1461 = vld [vmem:[#allocation8 + $0x280] sm:$0xff]
    %v1462 = vld [vmem:[#allocation8 + $0x288] sm:$0xff]
    %v1463 = vld [vmem:[#allocation8 + $0x290] sm:$0xff]
    %v1464 = vld [vmem:[#allocation8 + $0x298] sm:$0xff]
    %v1465 = vld [vmem:[#allocation8 + $0x2a0] sm:$0xff]
    %v1466 = vld [vmem:[#allocation8 + $0x2a8] sm:$0xff]
    %v1467 = vld [vmem:[#allocation8 + $0x2b0] sm:$0xff]
    %v1468 = vld [vmem:[#allocation8 + $0x2b8] sm:$0xff]
    %v1469 = vld [vmem:[#allocation8 + $0x2c0] sm:$0xff]
    %v1470 = vld [vmem:[#allocation8 + $0x2c8] sm:$0xff]
    %v1471 = vld [vmem:[#allocation8 + $0x2d0] sm:$0xff]
    %v1472 = vld [vmem:[#allocation8 + $0x2d8] sm:$0xff]
    %v1473 = vld [vmem:[#allocation8 + $0x2e0] sm:$0xff]
    %v1474 = vld [vmem:[#allocation8 + $0x2e8] sm:$0xff]
    %v1475 = vld [vmem:[#allocation8 + $0x2f0] sm:$0xff]
    %v1476 = vld [vmem:[#allocation8 + $0x2f8] sm:$0xff]
    %v1477 = vld [vmem:[#allocation8 + $0x300] sm:$0xff]
    %v1478 = vld [vmem:[#allocation8 + $0x308] sm:$0xff]
    %v1479 = vld [vmem:[#allocation8 + $0x310] sm:$0xff]
    %v1480 = vld [vmem:[#allocation8 + $0x318] sm:$0xff]
    %v1481 = vld [vmem:[#allocation8 + $0x320] sm:$0xff]
    %v1482 = vld [vmem:[#allocation8 + $0x328] sm:$0xff]
    %v1483 = vld [vmem:[#allocation8 + $0x330] sm:$0xff]
    %v1484 = vld [vmem:[#allocation8 + $0x338] sm:$0xff]
    %v1485 = vld [vmem:[#allocation8 + $0x340] sm:$0xff]
    %v1486 = vld [vmem:[#allocation8 + $0x348] sm:$0xff]
    %v1487 = vld [vmem:[#allocation8 + $0x350] sm:$0xff]
    %v1488 = vld [vmem:[#allocation8 + $0x358] sm:$0xff]
    %v1489 = vld [vmem:[#allocation8 + $0x360] sm:$0xff]
    %v1490 = vld [vmem:[#allocation8 + $0x368] sm:$0xff]
    %v1491 = vld [vmem:[#allocation8 + $0x370] sm:$0xff]
    %v1492 = vld [vmem:[#allocation8 + $0x378] sm:$0xff]
    %v1493 = vld [vmem:[#allocation8 + $0x380] sm:$0xff]
    %v1494 = vld [vmem:[#allocation8 + $0x388] sm:$0xff]
    %v1495 = vld [vmem:[#allocation8 + $0x390] sm:$0xff]
    %v1496 = vld [vmem:[#allocation8 + $0x398] sm:$0xff]
    %v1497 = vld [vmem:[#allocation8 + $0x3a0] sm:$0xff]
    %v1498 = vld [vmem:[#allocation8 + $0x3a8] sm:$0xff]
    %v1499 = vld [vmem:[#allocation8 + $0x3b0] sm:$0xff]
    %v1500 = vld [vmem:[#allocation8 + $0x3b8] sm:$0xff]
    %v1501 = vld [vmem:[#allocation8 + $0x3c0] sm:$0xff]
    %v1502 = vld [vmem:[#allocation8 + $0x3c8] sm:$0xff]
    %v1503 = vld [vmem:[#allocation8 + $0x3d0] sm:$0xff]
    %v1504 = vld [vmem:[#allocation8 + $0x3d8] sm:$0xff]
    %v1505 = vld [vmem:[#allocation8 + $0x3e0] sm:$0xff]
    %v1506 = vld [vmem:[#allocation8 + $0x3e8] sm:$0xff]
    %v1507 = vld [vmem:[#allocation8 + $0x3f0] sm:$0xff]
    %v1508 = vld [vmem:[#allocation8 + $0x3f8] sm:$0xff]
    %v1510 = vlaneseq
    %v1511 = vshrl.u32 %v1510, 7
    %v1512 = vsub.s32 0, %v1511
    %v1513 = vrot.slane %v233, %v1512
    %v1514 = vlaneseq
    %v1515 = vshrl.u32 %v1514, 7
    %v1516 = vsub.s32 1, %v1515
    %v1517 = vrot.slane %v233, %v1516
    %v1518 = vlaneseq
    %v1519 = vshrl.u32 %v1518, 7
    %v1520 = vsub.s32 2, %v1519
    %v1521 = vrot.slane %v233, %v1520
    %v1522 = vlaneseq
    %v1523 = vshrl.u32 %v1522, 7
    %v1524 = vsub.s32 3, %v1523
    %v1525 = vrot.slane %v233, %v1524
    %v1526 = vlaneseq
    %v1527 = vshrl.u32 %v1526, 7
    %v1528 = vsub.s32 4, %v1527
    %v1529 = vrot.slane %v233, %v1528
    %v1530 = vlaneseq
    %v1531 = vshrl.u32 %v1530, 7
    %v1532 = vsub.s32 5, %v1531
    %v1533 = vrot.slane %v233, %v1532
    %v1534 = vlaneseq
    %v1535 = vshrl.u32 %v1534, 7
    %v1536 = vsub.s32 6, %v1535
    %v1537 = vrot.slane %v233, %v1536
    %v1538 = vlaneseq
    %v1539 = vshrl.u32 %v1538, 7
    %v1540 = vsub.s32 7, %v1539
    %v1541 = vrot.slane %v233, %v1540
    %v1678 = vunpack.c.l.b16 %v1381
    %v1679 = vunpack.c.h.b16 %v1381
    %v1680 = vunpack.c.l.b16 %v1382
    %v1681 = vunpack.c.h.b16 %v1382
    %v1682 = vunpack.c.l.b16 %v1383
    %v1683 = vunpack.c.h.b16 %v1383
    %v1684 = vunpack.c.l.b16 %v1384
    %v1685 = vunpack.c.h.b16 %v1384
    %v1686 = vunpack.c.l.b16 %v1385
    %v1687 = vunpack.c.h.b16 %v1385
    %v1688 = vunpack.c.l.b16 %v1386
    %v1689 = vunpack.c.h.b16 %v1386
    %v1690 = vunpack.c.l.b16 %v1387
    %v1691 = vunpack.c.h.b16 %v1387
    %v1692 = vunpack.c.l.b16 %v1388
    %v1693 = vunpack.c.h.b16 %v1388
    %v1694 = vunpack.c.l.b16 %v1389
    %v1695 = vunpack.c.h.b16 %v1389
    %v1696 = vunpack.c.l.b16 %v1390
    %v1697 = vunpack.c.h.b16 %v1390
    %v1698 = vunpack.c.l.b16 %v1391
    %v1699 = vunpack.c.h.b16 %v1391
    %v1700 = vunpack.c.l.b16 %v1392
    %v1701 = vunpack.c.h.b16 %v1392
    %v1702 = vunpack.c.l.b16 %v1393
    %v1703 = vunpack.c.h.b16 %v1393
    %v1704 = vunpack.c.l.b16 %v1394
    %v1705 = vunpack.c.h.b16 %v1394
    %v1706 = vunpack.c.l.b16 %v1395
    %v1707 = vunpack.c.h.b16 %v1395
    %v1708 = vunpack.c.l.b16 %v1396
    %v1709 = vunpack.c.h.b16 %v1396
    %v1710 = vunpack.c.l.b16 %v1397
    %v1711 = vunpack.c.h.b16 %v1397
    %v1712 = vunpack.c.l.b16 %v1398
    %v1713 = vunpack.c.h.b16 %v1398
    %v1714 = vunpack.c.l.b16 %v1399
    %v1715 = vunpack.c.h.b16 %v1399
    %v1716 = vunpack.c.l.b16 %v1400
    %v1717 = vunpack.c.h.b16 %v1400
    %v1718 = vunpack.c.l.b16 %v1401
    %v1719 = vunpack.c.h.b16 %v1401
    %v1720 = vunpack.c.l.b16 %v1402
    %v1721 = vunpack.c.h.b16 %v1402
    %v1722 = vunpack.c.l.b16 %v1403
    %v1723 = vunpack.c.h.b16 %v1403
    %v1724 = vunpack.c.l.b16 %v1404
    %v1725 = vunpack.c.h.b16 %v1404
    %v1726 = vunpack.c.l.b16 %v1405
    %v1727 = vunpack.c.h.b16 %v1405
    %v1728 = vunpack.c.l.b16 %v1406
    %v1729 = vunpack.c.h.b16 %v1406
    %v1730 = vunpack.c.l.b16 %v1407
    %v1731 = vunpack.c.h.b16 %v1407
    %v1732 = vunpack.c.l.b16 %v1408
    %v1733 = vunpack.c.h.b16 %v1408
    %v1734 = vunpack.c.l.b16 %v1409
    %v1735 = vunpack.c.h.b16 %v1409
    %v1736 = vunpack.c.l.b16 %v1410
    %v1737 = vunpack.c.h.b16 %v1410
    %v1738 = vunpack.c.l.b16 %v1411
    %v1739 = vunpack.c.h.b16 %v1411
    %v1740 = vunpack.c.l.b16 %v1412
    %v1741 = vunpack.c.h.b16 %v1412
    %v1742 = vunpack.c.l.b16 %v1413
    %v1743 = vunpack.c.h.b16 %v1413
    %v1744 = vunpack.c.l.b16 %v1414
    %v1745 = vunpack.c.h.b16 %v1414
    %v1746 = vunpack.c.l.b16 %v1415
    %v1747 = vunpack.c.h.b16 %v1415
    %v1748 = vunpack.c.l.b16 %v1416
    %v1749 = vunpack.c.h.b16 %v1416
    %v1750 = vunpack.c.l.b16 %v1417
    %v1751 = vunpack.c.h.b16 %v1417
    %v1752 = vunpack.c.l.b16 %v1418
    %v1753 = vunpack.c.h.b16 %v1418
    %v1754 = vunpack.c.l.b16 %v1419
    %v1755 = vunpack.c.h.b16 %v1419
    %v1756 = vunpack.c.l.b16 %v1420
    %v1757 = vunpack.c.h.b16 %v1420
    %v1758 = vunpack.c.l.b16 %v1421
    %v1759 = vunpack.c.h.b16 %v1421
    %v1760 = vunpack.c.l.b16 %v1422
    %v1761 = vunpack.c.h.b16 %v1422
    %v1762 = vunpack.c.l.b16 %v1423
    %v1763 = vunpack.c.h.b16 %v1423
    %v1764 = vunpack.c.l.b16 %v1424
    %v1765 = vunpack.c.h.b16 %v1424
    %v1766 = vunpack.c.l.b16 %v1425
    %v1767 = vunpack.c.h.b16 %v1425
    %v1768 = vunpack.c.l.b16 %v1426
    %v1769 = vunpack.c.h.b16 %v1426
    %v1770 = vunpack.c.l.b16 %v1427
    %v1771 = vunpack.c.h.b16 %v1427
    %v1772 = vunpack.c.l.b16 %v1428
    %v1773 = vunpack.c.h.b16 %v1428
    %v1774 = vunpack.c.l.b16 %v1429
    %v1775 = vunpack.c.h.b16 %v1429
    %v1776 = vunpack.c.l.b16 %v1430
    %v1777 = vunpack.c.h.b16 %v1430
    %v1778 = vunpack.c.l.b16 %v1431
    %v1779 = vunpack.c.h.b16 %v1431
    %v1780 = vunpack.c.l.b16 %v1432
    %v1781 = vunpack.c.h.b16 %v1432
    %v1782 = vunpack.c.l.b16 %v1433
    %v1783 = vunpack.c.h.b16 %v1433
    %v1784 = vunpack.c.l.b16 %v1434
    %v1785 = vunpack.c.h.b16 %v1434
    %v1786 = vunpack.c.l.b16 %v1435
    %v1787 = vunpack.c.h.b16 %v1435
    %v1788 = vunpack.c.l.b16 %v1436
    %v1789 = vunpack.c.h.b16 %v1436
    %v1790 = vunpack.c.l.b16 %v1437
    %v1791 = vunpack.c.h.b16 %v1437
    %v1792 = vunpack.c.l.b16 %v1438
    %v1793 = vunpack.c.h.b16 %v1438
    %v1794 = vunpack.c.l.b16 %v1439
    %v1795 = vunpack.c.h.b16 %v1439
    %v1796 = vunpack.c.l.b16 %v1440
    %v1797 = vunpack.c.h.b16 %v1440
    %v1798 = vunpack.c.l.b16 %v1441
    %v1799 = vunpack.c.h.b16 %v1441
    %v1800 = vunpack.c.l.b16 %v1442
    %v1801 = vunpack.c.h.b16 %v1442
    %v1802 = vunpack.c.l.b16 %v1443
    %v1803 = vunpack.c.h.b16 %v1443
    %v1804 = vunpack.c.l.b16 %v1444
    %v1805 = vunpack.c.h.b16 %v1444
    %v1806 = vunpack.c.l.b16 %v1445
    %v1807 = vunpack.c.h.b16 %v1445
    %v1808 = vunpack.c.l.b16 %v1446
    %v1809 = vunpack.c.h.b16 %v1446
    %v1810 = vunpack.c.l.b16 %v1447
    %v1811 = vunpack.c.h.b16 %v1447
    %v1812 = vunpack.c.l.b16 %v1448
    %v1813 = vunpack.c.h.b16 %v1448
    %v1814 = vunpack.c.l.b16 %v1449
    %v1815 = vunpack.c.h.b16 %v1449
    %v1816 = vunpack.c.l.b16 %v1450
    %v1817 = vunpack.c.h.b16 %v1450
    %v1818 = vunpack.c.l.b16 %v1451
    %v1819 = vunpack.c.h.b16 %v1451
    %v1820 = vunpack.c.l.b16 %v1452
    %v1821 = vunpack.c.h.b16 %v1452
    %v1822 = vunpack.c.l.b16 %v1453
    %v1823 = vunpack.c.h.b16 %v1453
    %v1824 = vunpack.c.l.b16 %v1454
    %v1825 = vunpack.c.h.b16 %v1454
    %v1826 = vunpack.c.l.b16 %v1455
    %v1827 = vunpack.c.h.b16 %v1455
    %v1828 = vunpack.c.l.b16 %v1456
    %v1829 = vunpack.c.h.b16 %v1456
    %v1830 = vunpack.c.l.b16 %v1457
    %v1831 = vunpack.c.h.b16 %v1457
    %v1832 = vunpack.c.l.b16 %v1458
    %v1833 = vunpack.c.h.b16 %v1458
    %v1834 = vunpack.c.l.b16 %v1459
    %v1835 = vunpack.c.h.b16 %v1459
    %v1836 = vunpack.c.l.b16 %v1460
    %v1837 = vunpack.c.h.b16 %v1460
    %v1838 = vunpack.c.l.b16 %v1461
    %v1839 = vunpack.c.h.b16 %v1461
    %v1840 = vunpack.c.l.b16 %v1462
    %v1841 = vunpack.c.h.b16 %v1462
    %v1842 = vunpack.c.l.b16 %v1463
    %v1843 = vunpack.c.h.b16 %v1463
    %v1844 = vunpack.c.l.b16 %v1464
    %v1845 = vunpack.c.h.b16 %v1464
    %v1846 = vunpack.c.l.b16 %v1465
    %v1847 = vunpack.c.h.b16 %v1465
    %v1848 = vunpack.c.l.b16 %v1466
    %v1849 = vunpack.c.h.b16 %v1466
    %v1850 = vunpack.c.l.b16 %v1467
    %v1851 = vunpack.c.h.b16 %v1467
    %v1852 = vunpack.c.l.b16 %v1468
    %v1853 = vunpack.c.h.b16 %v1468
    %v1854 = vunpack.c.l.b16 %v1469
    %v1855 = vunpack.c.h.b16 %v1469
    %v1856 = vunpack.c.l.b16 %v1470
    %v1857 = vunpack.c.h.b16 %v1470
    %v1858 = vunpack.c.l.b16 %v1471
    %v1859 = vunpack.c.h.b16 %v1471
    %v1860 = vunpack.c.l.b16 %v1472
    %v1861 = vunpack.c.h.b16 %v1472
    %v1862 = vunpack.c.l.b16 %v1473
    %v1863 = vunpack.c.h.b16 %v1473
    %v1864 = vunpack.c.l.b16 %v1474
    %v1865 = vunpack.c.h.b16 %v1474
    %v1866 = vunpack.c.l.b16 %v1475
    %v1867 = vunpack.c.h.b16 %v1475
    %v1868 = vunpack.c.l.b16 %v1476
    %v1869 = vunpack.c.h.b16 %v1476
    %v1870 = vunpack.c.l.b16 %v1477
    %v1871 = vunpack.c.h.b16 %v1477
    %v1872 = vunpack.c.l.b16 %v1478
    %v1873 = vunpack.c.h.b16 %v1478
    %v1874 = vunpack.c.l.b16 %v1479
    %v1875 = vunpack.c.h.b16 %v1479
    %v1876 = vunpack.c.l.b16 %v1480
    %v1877 = vunpack.c.h.b16 %v1480
    %v1878 = vunpack.c.l.b16 %v1481
    %v1879 = vunpack.c.h.b16 %v1481
    %v1880 = vunpack.c.l.b16 %v1482
    %v1881 = vunpack.c.h.b16 %v1482
    %v1882 = vunpack.c.l.b16 %v1483
    %v1883 = vunpack.c.h.b16 %v1483
    %v1884 = vunpack.c.l.b16 %v1484
    %v1885 = vunpack.c.h.b16 %v1484
    %v1886 = vunpack.c.l.b16 %v1485
    %v1887 = vunpack.c.h.b16 %v1485
    %v1888 = vunpack.c.l.b16 %v1486
    %v1889 = vunpack.c.h.b16 %v1486
    %v1890 = vunpack.c.l.b16 %v1487
    %v1891 = vunpack.c.h.b16 %v1487
    %v1892 = vunpack.c.l.b16 %v1488
    %v1893 = vunpack.c.h.b16 %v1488
    %v1894 = vunpack.c.l.b16 %v1489
    %v1895 = vunpack.c.h.b16 %v1489
    %v1896 = vunpack.c.l.b16 %v1490
    %v1897 = vunpack.c.h.b16 %v1490
    %v1898 = vunpack.c.l.b16 %v1491
    %v1899 = vunpack.c.h.b16 %v1491
    %v1900 = vunpack.c.l.b16 %v1492
    %v1901 = vunpack.c.h.b16 %v1492
    %v1902 = vunpack.c.l.b16 %v1493
    %v1903 = vunpack.c.h.b16 %v1493
    %v1904 = vunpack.c.l.b16 %v1494
    %v1905 = vunpack.c.h.b16 %v1494
    %v1906 = vunpack.c.l.b16 %v1495
    %v1907 = vunpack.c.h.b16 %v1495
    %v1908 = vunpack.c.l.b16 %v1496
    %v1909 = vunpack.c.h.b16 %v1496
    %v1910 = vunpack.c.l.b16 %v1497
    %v1911 = vunpack.c.h.b16 %v1497
    %v1912 = vunpack.c.l.b16 %v1498
    %v1913 = vunpack.c.h.b16 %v1498
    %v1914 = vunpack.c.l.b16 %v1499
    %v1915 = vunpack.c.h.b16 %v1499
    %v1916 = vunpack.c.l.b16 %v1500
    %v1917 = vunpack.c.h.b16 %v1500
    %v1918 = vunpack.c.l.b16 %v1501
    %v1919 = vunpack.c.h.b16 %v1501
    %v1920 = vunpack.c.l.b16 %v1502
    %v1921 = vunpack.c.h.b16 %v1502
    %v1922 = vunpack.c.l.b16 %v1503
    %v1923 = vunpack.c.h.b16 %v1503
    %v1924 = vunpack.c.l.b16 %v1504
    %v1925 = vunpack.c.h.b16 %v1504
    %v1926 = vunpack.c.l.b16 %v1505
    %v1927 = vunpack.c.h.b16 %v1505
    %v1928 = vunpack.c.l.b16 %v1506
    %v1929 = vunpack.c.h.b16 %v1506
    %v1930 = vunpack.c.l.b16 %v1507
    %v1931 = vunpack.c.h.b16 %v1507
    %v1932 = vunpack.c.l.b16 %v1508
    %v1933 = vunpack.c.h.b16 %v1508
    %v1934 = vpack.c.b16 %v1686, %v1678
    %v1935 = vpack.c.b16 %v1687, %v1679
    %v1936 = vpack.c.b16 %v1688, %v1680
    %v1937 = vpack.c.b16 %v1689, %v1681
    %v1938 = vpack.c.b16 %v1690, %v1682
    %v1939 = vpack.c.b16 %v1691, %v1683
    %v1940 = vpack.c.b16 %v1692, %v1684
    %v1941 = vpack.c.b16 %v1693, %v1685
    %v1942 = vpack.c.b16 %v1702, %v1694
    %v1943 = vpack.c.b16 %v1703, %v1695
    %v1944 = vpack.c.b16 %v1704, %v1696
    %v1945 = vpack.c.b16 %v1705, %v1697
    %v1946 = vpack.c.b16 %v1706, %v1698
    %v1947 = vpack.c.b16 %v1707, %v1699
    %v1948 = vpack.c.b16 %v1708, %v1700
    %v1949 = vpack.c.b16 %v1709, %v1701
    %v1950 = vpack.c.b16 %v1718, %v1710
    %v1951 = vpack.c.b16 %v1719, %v1711
    %v1952 = vpack.c.b16 %v1720, %v1712
    %v1953 = vpack.c.b16 %v1721, %v1713
    %v1954 = vpack.c.b16 %v1722, %v1714
    %v1955 = vpack.c.b16 %v1723, %v1715
    %v1956 = vpack.c.b16 %v1724, %v1716
    %v1957 = vpack.c.b16 %v1725, %v1717
    %v1958 = vpack.c.b16 %v1734, %v1726
    %v1959 = vpack.c.b16 %v1735, %v1727
    %v1960 = vpack.c.b16 %v1736, %v1728
    %v1961 = vpack.c.b16 %v1737, %v1729
    %v1962 = vpack.c.b16 %v1738, %v1730
    %v1963 = vpack.c.b16 %v1739, %v1731
    %v1964 = vpack.c.b16 %v1740, %v1732
    %v1965 = vpack.c.b16 %v1741, %v1733
    %v1966 = vpack.c.b16 %v1750, %v1742
    %v1967 = vpack.c.b16 %v1751, %v1743
    %v1968 = vpack.c.b16 %v1752, %v1744
    %v1969 = vpack.c.b16 %v1753, %v1745
    %v1970 = vpack.c.b16 %v1754, %v1746
    %v1971 = vpack.c.b16 %v1755, %v1747
    %v1972 = vpack.c.b16 %v1756, %v1748
    %v1973 = vpack.c.b16 %v1757, %v1749
    %v1974 = vpack.c.b16 %v1766, %v1758
    %v1975 = vpack.c.b16 %v1767, %v1759
    %v1976 = vpack.c.b16 %v1768, %v1760
    %v1977 = vpack.c.b16 %v1769, %v1761
    %v1978 = vpack.c.b16 %v1770, %v1762
    %v1979 = vpack.c.b16 %v1771, %v1763
    %v1980 = vpack.c.b16 %v1772, %v1764
    %v1981 = vpack.c.b16 %v1773, %v1765
    %v1982 = vpack.c.b16 %v1782, %v1774
    %v1983 = vpack.c.b16 %v1783, %v1775
    %v1984 = vpack.c.b16 %v1784, %v1776
    %v1985 = vpack.c.b16 %v1785, %v1777
    %v1986 = vpack.c.b16 %v1786, %v1778
    %v1987 = vpack.c.b16 %v1787, %v1779
    %v1988 = vpack.c.b16 %v1788, %v1780
    %v1989 = vpack.c.b16 %v1789, %v1781
    %v1990 = vpack.c.b16 %v1798, %v1790
    %v1991 = vpack.c.b16 %v1799, %v1791
    %v1992 = vpack.c.b16 %v1800, %v1792
    %v1993 = vpack.c.b16 %v1801, %v1793
    %v1994 = vpack.c.b16 %v1802, %v1794
    %v1995 = vpack.c.b16 %v1803, %v1795
    %v1996 = vpack.c.b16 %v1804, %v1796
    %v1997 = vpack.c.b16 %v1805, %v1797
    %v1998 = vpack.c.b16 %v1814, %v1806
    %v1999 = vpack.c.b16 %v1815, %v1807
    %v2000 = vpack.c.b16 %v1816, %v1808
    %v2001 = vpack.c.b16 %v1817, %v1809
    %v2002 = vpack.c.b16 %v1818, %v1810
    %v2003 = vpack.c.b16 %v1819, %v1811
    %v2004 = vpack.c.b16 %v1820, %v1812
    %v2005 = vpack.c.b16 %v1821, %v1813
    %v2006 = vpack.c.b16 %v1830, %v1822
    %v2007 = vpack.c.b16 %v1831, %v1823
    %v2008 = vpack.c.b16 %v1832, %v1824
    %v2009 = vpack.c.b16 %v1833, %v1825
    %v2010 = vpack.c.b16 %v1834, %v1826
    %v2011 = vpack.c.b16 %v1835, %v1827
    %v2012 = vpack.c.b16 %v1836, %v1828
    %v2013 = vpack.c.b16 %v1837, %v1829
    %v2014 = vpack.c.b16 %v1846, %v1838
    %v2015 = vpack.c.b16 %v1847, %v1839
    %v2016 = vpack.c.b16 %v1848, %v1840
    %v2017 = vpack.c.b16 %v1849, %v1841
    %v2018 = vpack.c.b16 %v1850, %v1842
    %v2019 = vpack.c.b16 %v1851, %v1843
    %v2020 = vpack.c.b16 %v1852, %v1844
    %v2021 = vpack.c.b16 %v1853, %v1845
    %v2022 = vpack.c.b16 %v1862, %v1854
    %v2023 = vpack.c.b16 %v1863, %v1855
    %v2024 = vpack.c.b16 %v1864, %v1856
    %v2025 = vpack.c.b16 %v1865, %v1857
    %v2026 = vpack.c.b16 %v1866, %v1858
    %v2027 = vpack.c.b16 %v1867, %v1859
    %v2028 = vpack.c.b16 %v1868, %v1860
    %v2029 = vpack.c.b16 %v1869, %v1861
    %v2030 = vpack.c.b16 %v1878, %v1870
    %v2031 = vpack.c.b16 %v1879, %v1871
    %v2032 = vpack.c.b16 %v1880, %v1872
    %v2033 = vpack.c.b16 %v1881, %v1873
    %v2034 = vpack.c.b16 %v1882, %v1874
    %v2035 = vpack.c.b16 %v1883, %v1875
    %v2036 = vpack.c.b16 %v1884, %v1876
    %v2037 = vpack.c.b16 %v1885, %v1877
    %v2038 = vpack.c.b16 %v1894, %v1886
    %v2039 = vpack.c.b16 %v1895, %v1887
    %v2040 = vpack.c.b16 %v1896, %v1888
    %v2041 = vpack.c.b16 %v1897, %v1889
    %v2042 = vpack.c.b16 %v1898, %v1890
    %v2043 = vpack.c.b16 %v1899, %v1891
    %v2044 = vpack.c.b16 %v1900, %v1892
    %v2045 = vpack.c.b16 %v1901, %v1893
    %v2046 = vpack.c.b16 %v1910, %v1902
    %v2047 = vpack.c.b16 %v1911, %v1903
    %v2048 = vpack.c.b16 %v1912, %v1904
    %v2049 = vpack.c.b16 %v1913, %v1905
    %v2050 = vpack.c.b16 %v1914, %v1906
    %v2051 = vpack.c.b16 %v1915, %v1907
    %v2052 = vpack.c.b16 %v1916, %v1908
    %v2053 = vpack.c.b16 %v1917, %v1909
    %v2054 = vpack.c.b16 %v1926, %v1918
    %v2055 = vpack.c.b16 %v1927, %v1919
    %v2056 = vpack.c.b16 %v1928, %v1920
    %v2057 = vpack.c.b16 %v1929, %v1921
    %v2058 = vpack.c.b16 %v1930, %v1922
    %v2059 = vpack.c.b16 %v1931, %v1923
    %v2060 = vpack.c.b16 %v1932, %v1924
    %v2061 = vpack.c.b16 %v1933, %v1925
    %2190 = vmatprep.subr.bf16.mxu0 %v1991
    %2191 = vmatpush1.bf16.msra.mxu0 %v1990
    %2192 = vmatprep.subr.bf16.mxu0 %v1983
    %2193 = vmatpush1.bf16.msra.mxu0 %v1982
    %2194 = vmatprep.subr.bf16.mxu0 %v1975
    %2195 = vmatpush1.bf16.msra.mxu0 %v1974
    %2196 = vmatprep.subr.bf16.mxu0 %v1967
    %2197 = vmatpush1.bf16.msra.mxu0 %v1966
    %2198 = vmatprep.subr.bf16.mxu0 %v1959
    %2199 = vmatpush1.bf16.msra.mxu0 %v1958
    %2200 = vmatprep.subr.bf16.mxu0 %v1951
    %2201 = vmatpush1.bf16.msra.mxu0 %v1950
    %2202 = vmatprep.subr.bf16.mxu0 %v1943
    %2203 = vmatpush1.bf16.msra.mxu0 %v1942
    %2204 = vmatprep.subr.bf16.mxu0 %v1935
    %2205 = vmatpush1.bf16.msra.mxu0 %v1934
    %2206 = vmatprep.subr.bf16.mxu0 %v2055
    %2207 = vmatpush2.bf16.msra.mxu0 %v2054
    %2208 = vmatprep.subr.bf16.mxu0 %v2047
    %2209 = vmatpush2.bf16.msra.mxu0 %v2046
    %2210 = vmatprep.subr.bf16.mxu0 %v2039
    %2211 = vmatpush2.bf16.msra.mxu0 %v2038
    %2212 = vmatprep.subr.bf16.mxu0 %v2031
    %2213 = vmatpush2.bf16.msra.mxu0 %v2030
    %2214 = vmatprep.subr.bf16.mxu0 %v2023
    %2215 = vmatpush2.bf16.msra.mxu0 %v2022
    %2216 = vmatprep.subr.bf16.mxu0 %v2015
    %2217 = vmatpush2.bf16.msra.mxu0 %v2014
    %2218 = vmatprep.subr.bf16.mxu0 %v2007
    %2219 = vmatpush2.bf16.msra.mxu0 %v2006
    %2220 = vmatprep.subr.bf16.mxu0 %v1999
    %2221 = vmatpush2.bf16.msra.mxu0 %v1998
    %2222 = vmatprep.mubr.bf16.mxu0 %v1380
    %2223 = vmatmul.mubr.bf16.gmra.mxu0 %v1379
    %v2224 = vpop.f32.mrf.mxu0
    %v2225 = vadd.f32 %v1513, %v2224
    %v2226 = vpop.f32.mrf.mxu0
    %v2227 = vadd.f32 %v1517, %v2226
    %v2228 = vpop.f32.mrf.mxu0
    %v2229 = vpop.f32.mrf.mxu0
    %2230 = vdwg.mxu0
    %2231 = vmatprep.subr.bf16.mxu0 %v1993
    %2232 = vmatpush1.bf16.msra.mxu0 %v1992
    %2233 = vmatprep.subr.bf16.mxu0 %v1985
    %2234 = vmatpush1.bf16.msra.mxu0 %v1984
    %2235 = vmatprep.subr.bf16.mxu0 %v1977
    %2236 = vmatpush1.bf16.msra.mxu0 %v1976
    %2237 = vmatprep.subr.bf16.mxu0 %v1969
    %2238 = vmatpush1.bf16.msra.mxu0 %v1968
    %2239 = vmatprep.subr.bf16.mxu0 %v1961
    %2240 = vmatpush1.bf16.msra.mxu0 %v1960
    %2241 = vmatprep.subr.bf16.mxu0 %v1953
    %2242 = vmatpush1.bf16.msra.mxu0 %v1952
    %2243 = vmatprep.subr.bf16.mxu0 %v1945
    %2244 = vmatpush1.bf16.msra.mxu0 %v1944
    %2245 = vmatprep.subr.bf16.mxu0 %v1937
    %2246 = vmatpush1.bf16.msra.mxu0 %v1936
    %2247 = vmatprep.subr.bf16.mxu0 %v2057
    %2248 = vmatpush2.bf16.msra.mxu0 %v2056
    %2249 = vmatprep.subr.bf16.mxu0 %v2049
    %2250 = vmatpush2.bf16.msra.mxu0 %v2048
    %2251 = vmatprep.subr.bf16.mxu0 %v2041
    %2252 = vmatpush2.bf16.msra.mxu0 %v2040
    %2253 = vmatprep.subr.bf16.mxu0 %v2033
    %2254 = vmatpush2.bf16.msra.mxu0 %v2032
    %2255 = vmatprep.subr.bf16.mxu0 %v2025
    %2256 = vmatpush2.bf16.msra.mxu0 %v2024
    %2257 = vmatprep.subr.bf16.mxu0 %v2017
    %2258 = vmatpush2.bf16.msra.mxu0 %v2016
    %2259 = vmatprep.subr.bf16.mxu0 %v2009
    %2260 = vmatpush2.bf16.msra.mxu0 %v2008
    %2261 = vmatprep.subr.bf16.mxu0 %v2001
    %2262 = vmatpush2.bf16.msra.mxu0 %v2000
    %2263 = vmatprep.mubr.bf16.mxu0 %v1380
    %2264 = vmatmul.mubr.bf16.gmra.mxu0 %v1379
    %v2265 = vpop.f32.mrf.mxu0
    %v2266 = vadd.f32 %v1521, %v2265
    %v2267 = vpop.f32.mrf.mxu0
    %v2268 = vadd.f32 %v1525, %v2267
    %v2269 = vpop.f32.mrf.mxu0
    %v2270 = vpop.f32.mrf.mxu0
    %2271 = vdwg.mxu0
    %2272 = vmatprep.subr.bf16.mxu0 %v1995
    %2273 = vmatpush1.bf16.msra.mxu0 %v1994
    %2274 = vmatprep.subr.bf16.mxu0 %v1987
    %2275 = vmatpush1.bf16.msra.mxu0 %v1986
    %2276 = vmatprep.subr.bf16.mxu0 %v1979
    %2277 = vmatpush1.bf16.msra.mxu0 %v1978
    %2278 = vmatprep.subr.bf16.mxu0 %v1971
    %2279 = vmatpush1.bf16.msra.mxu0 %v1970
    %2280 = vmatprep.subr.bf16.mxu0 %v1963
    %2281 = vmatpush1.bf16.msra.mxu0 %v1962
    %2282 = vmatprep.subr.bf16.mxu0 %v1955
    %2283 = vmatpush1.bf16.msra.mxu0 %v1954
    %2284 = vmatprep.subr.bf16.mxu0 %v1947
    %2285 = vmatpush1.bf16.msra.mxu0 %v1946
    %2286 = vmatprep.subr.bf16.mxu0 %v1939
    %2287 = vmatpush1.bf16.msra.mxu0 %v1938
    %2288 = vmatprep.subr.bf16.mxu0 %v2059
    %2289 = vmatpush2.bf16.msra.mxu0 %v2058
    %2290 = vmatprep.subr.bf16.mxu0 %v2051
    %2291 = vmatpush2.bf16.msra.mxu0 %v2050
    %2292 = vmatprep.subr.bf16.mxu0 %v2043
    %2293 = vmatpush2.bf16.msra.mxu0 %v2042
    %2294 = vmatprep.subr.bf16.mxu0 %v2035
    %2295 = vmatpush2.bf16.msra.mxu0 %v2034
    %2296 = vmatprep.subr.bf16.mxu0 %v2027
    %2297 = vmatpush2.bf16.msra.mxu0 %v2026
    %2298 = vmatprep.subr.bf16.mxu0 %v2019
    %2299 = vmatpush2.bf16.msra.mxu0 %v2018
    %2300 = vmatprep.subr.bf16.mxu0 %v2011
    %2301 = vmatpush2.bf16.msra.mxu0 %v2010
    %2302 = vmatprep.subr.bf16.mxu0 %v2003
    %2303 = vmatpush2.bf16.msra.mxu0 %v2002
    %2304 = vmatprep.mubr.bf16.mxu0 %v1380
    %2305 = vmatmul.mubr.bf16.gmra.mxu0 %v1379
    %v2306 = vpop.f32.mrf.mxu0
    %v2307 = vadd.f32 %v1529, %v2306
    %v2308 = vpop.f32.mrf.mxu0
    %v2309 = vadd.f32 %v1533, %v2308
    %v2310 = vpop.f32.mrf.mxu0
    %v2311 = vpop.f32.mrf.mxu0
    %2312 = vdwg.mxu0
    %2313 = vmatprep.subr.bf16.mxu0 %v1997
    %2314 = vmatpush1.bf16.msra.mxu0 %v1996
    %2315 = vmatprep.subr.bf16.mxu0 %v1989
    %2316 = vmatpush1.bf16.msra.mxu0 %v1988
    %2317 = vmatprep.subr.bf16.mxu0 %v1981
    %2318 = vmatpush1.bf16.msra.mxu0 %v1980
    %2319 = vmatprep.subr.bf16.mxu0 %v1973
    %2320 = vmatpush1.bf16.msra.mxu0 %v1972
    %2321 = vmatprep.subr.bf16.mxu0 %v1965
    %2322 = vmatpush1.bf16.msra.mxu0 %v1964
    %2323 = vmatprep.subr.bf16.mxu0 %v1957
    %2324 = vmatpush1.bf16.msra.mxu0 %v1956
    %2325 = vmatprep.subr.bf16.mxu0 %v1949
    %2326 = vmatpush1.bf16.msra.mxu0 %v1948
    %2327 = vmatprep.subr.bf16.mxu0 %v1941
    %2328 = vmatpush1.bf16.msra.mxu0 %v1940
    %2329 = vmatprep.subr.bf16.mxu0 %v2061
    %2330 = vmatpush2.bf16.msra.mxu0 %v2060
    %2331 = vmatprep.subr.bf16.mxu0 %v2053
    %2332 = vmatpush2.bf16.msra.mxu0 %v2052
    %2333 = vmatprep.subr.bf16.mxu0 %v2045
    %2334 = vmatpush2.bf16.msra.mxu0 %v2044
    %2335 = vmatprep.subr.bf16.mxu0 %v2037
    %2336 = vmatpush2.bf16.msra.mxu0 %v2036
    %2337 = vmatprep.subr.bf16.mxu0 %v2029
    %2338 = vmatpush2.bf16.msra.mxu0 %v2028
    %2339 = vmatprep.subr.bf16.mxu0 %v2021
    %2340 = vmatpush2.bf16.msra.mxu0 %v2020
    %2341 = vmatprep.subr.bf16.mxu0 %v2013
    %2342 = vmatpush2.bf16.msra.mxu0 %v2012
    %2343 = vmatprep.subr.bf16.mxu0 %v2005
    %2344 = vmatpush2.bf16.msra.mxu0 %v2004
    %2345 = vmatprep.mubr.bf16.mxu0 %v1380
    %2346 = vmatmul.mubr.bf16.gmra.mxu0 %v1379
    %v2347 = vpop.f32.mrf.mxu0
    %v2348 = vadd.f32 %v1537, %v2347
    %v2349 = vpop.f32.mrf.mxu0
    %v2350 = vadd.f32 %v1541, %v2349
    %v2351 = vpop.f32.mrf.mxu0
    %v2352 = vpop.f32.mrf.mxu0
    %2353 = vdwg.mxu0
    %2354 = vst [vmem:[#allocation11] sm:$0xff] %v2225
    %2355 = vst [vmem:[#allocation11 + $0x8] sm:$0xff] %v2227
    %2356 = vst [vmem:[#allocation11 + $0x10] sm:$0xff] %v2266
    %2357 = vst [vmem:[#allocation11 + $0x18] sm:$0xff] %v2268
    %2358 = vst [vmem:[#allocation11 + $0x20] sm:$0xff] %v2307
    %2359 = vst [vmem:[#allocation11 + $0x28] sm:$0xff] %v2309
    %2360 = vst [vmem:[#allocation11 + $0x30] sm:$0xff] %v2348
    %2361 = vst [vmem:[#allocation11 + $0x38] sm:$0xff] %v2350
    // Predicated region
    $region42: #{tpu_custom_call.1} parent=1 // pred_check
      _
    $region43: #{tpu_custom_call.1} parent=1 // pred_check_branch
      %2363 = sbr.rel (0) target = $region45
    $region44: #{tpu_custom_call.1} parent=1 // pred_region
      %s2365 = ssub.s32 1024, 1024
      %2366 = vsyncadd [#allocation4], %s2365
      %s2368 = sshll.u32 [#allocation11], 4
      %s2369 = int_to_ptr.vmem [resolvable:$true] %s2368
      %2371 = dma.vmem_to_hbm [thread:$0]  %s2369, 1024, %s5, [#allocation4]
    $region45: #{tpu_custom_call.1} parent=1 // pred_fallthru
      _
    // Predicated region
    $region46: #{tpu_custom_call.1} parent=1 // pred_check
      _
    $region47: #{tpu_custom_call.1} parent=1 // pred_check_branch
      %2373 = sbr.rel (0) target = $region49
    $region48: #{tpu_custom_call.1} parent=1 // pred_region
      %2374 = dma.done [#allocation4], 1024
    $region49: #{tpu_custom_call.1} parent=1 // pred_fallthru
      _
    %2375 = vsyncpa [#allocation3], 1
    %2376 = vsyncpa [#allocation6], 1
    %2377 = vsyncpa [#allocation9], 1
    %2378 = vsyncpa [#allocation4], 1

</llo_original>
